<compile_context>
chip_gen: v7x
topology: tpu7x:2x2x1
jax: 0.10.0
libtpu: 0.0.40
codegen_flags: <defaults>
</compile_context>

<pallas_src>
import math

import jax
import jax.numpy as jnp
from jax.experimental import pallas as pl
from jax.experimental.pallas import tpu as pltpu

LANE = 128       # TPU lane quantum (last dim)
SUB_BF16 = 16    # bf16 sublane packing quantum (second-to-last dim)

# Static layer widths of CNN_stat (kept OUT of the traced params pytree).
CONV1_OUT = 10
CONV2_OUT = 20
FC1_IN = 320
FC1_OUT = 50
FC2_OUT = 10


def _round_up(x, m):
    return (x + m - 1) // m * m


def _choose_bm(M):
    """M-tile size: big blocks amortize ~0.35us/grid-step overhead; keep >=2
    blocks when M is large enough so both v7x TensorCores get work."""
    if M <= 2 * SUB_BF16:
        return _round_up(max(M, 1), SUB_BF16)          # one tiny block
    if M <= 1024:
        return _round_up(pl.cdiv(M, 2), SUB_BF16)      # exactly two blocks
    return 512                                         # big-batch steady state


# ----------------------------------------------------------------------------
# Pallas kernel 1: single-K-step matmul with fused bias add (used for convs)
#   A[bm, Kp] (bf16) @ B[Kp, Np] (bf16) -> f32, + bias[1, Np]
# ----------------------------------------------------------------------------
def _matmul_bias_kernel(a_ref, b_ref, bias_ref, o_ref):
    o_ref[...] = (
        jnp.dot(a_ref[...], b_ref[...], preferred_element_type=jnp.float32)
        + bias_ref[...]
    )


def pallas_matmul_bias(a, w_pad, bias_pad, n_out):
    """a: [M, K]; w_pad: [Kp, Np] bf16 (pre-padded); bias_pad: [1, Np] f32.
    n_out is a static Python int.  Returns f32 [M, n_out]."""
    M, K = a.shape
    Kp, Np = w_pad.shape

    bm = _choose_bm(M)
    Mp = _round_up(M, bm)

    a_p = a.astype(jnp.bfloat16)
    if Mp != M or Kp != K:
        a_p = jnp.pad(a_p, ((0, Mp - M), (0, Kp - K)))  # fuses with producer

    grid = (Mp // bm,)
    out = pl.pallas_call(
        _matmul_bias_kernel,
        out_shape=jax.ShapeDtypeStruct((Mp, Np), jnp.float32),
        grid_spec=pltpu.PrefetchScalarGridSpec(
            num_scalar_prefetch=0,
            grid=grid,
            in_specs=[
                pl.BlockSpec((bm, Kp), lambda i: (i, 0)),
                pl.BlockSpec((Kp, Np), lambda i: (0, 0)),
                pl.BlockSpec((1, Np), lambda i: (0, 0)),
            ],
            out_specs=pl.BlockSpec((bm, Np), lambda i: (i, 0)),
        ),
        compiler_params=pltpu.CompilerParams(
            dimension_semantics=("parallel",)),
    )(a_p, w_pad, bias_pad)
    return out[:M, :n_out]


# ----------------------------------------------------------------------------
# Pallas kernel 2: fused FC tail
#   h1 = x@W1 + b1 ; a = relu(h1)*drop_mask ; h2 = a@W2 + b2 ;
#   logp = masked log_softmax(h2) over the first FC2_OUT lanes.
# Emits h1 and h2 too (needed for the x8..x11 stats).
# ----------------------------------------------------------------------------
def _fc_tail_kernel(x_ref, w1_ref, b1_ref, w2_ref, b2_ref, mask_ref,
                    h1_ref, h2_ref, logp_ref):
    h1 = (jnp.dot(x_ref[...], w1_ref[...], preferred_element_type=jnp.float32)
          + b1_ref[...])
    h1_ref[...] = h1
    a = (jnp.maximum(h1, 0.0) * mask_ref[...]).astype(jnp.bfloat16)
    h2 = (jnp.dot(a, w2_ref[...], preferred_element_type=jnp.float32)
          + b2_ref[...])
    h2_ref[...] = h2
    # log_softmax over the FC2_OUT valid lanes (rest of the 128 lanes are pad)
    col = jax.lax.broadcasted_iota(jnp.int32, h2.shape, 1)
    valid = col < FC2_OUT
    m = jnp.max(jnp.where(valid, h2, -1e30), axis=-1, keepdims=True)
    e = jnp.where(valid, jnp.exp(h2 - m), 0.0)
    lse = jnp.log(jnp.sum(e, axis=-1, keepdims=True)) + m
    logp_ref[...] = h2 - lse


def pallas_fc_tail(x, w1, b1, w2, b2, mask_valid):
    """x: [M, 320]; w1: [Kp, N1p] bf16; w2: [N1p, N2p] bf16;
    mask_valid: [M, FC1_OUT] f32 dropout scale mask (ones in eval)."""
    M, K = x.shape
    Kp, N1p = w1.shape
    K2p, N2p = w2.shape
    assert K2p == N1p, "fc2's padded K must match fc1's padded N"

    bm = _choose_bm(M)
    Mp = _round_up(M, bm)

    x_p = jnp.pad(x.astype(jnp.bfloat16), ((0, Mp - M), (0, Kp - K)))
    mask_p = jnp.pad(mask_valid.astype(jnp.float32),
                     ((0, Mp - M), (0, N1p - mask_valid.shape[1])))

    grid = (Mp // bm,)
    h1, h2, logp = pl.pallas_call(
        _fc_tail_kernel,
        out_shape=(jax.ShapeDtypeStruct((Mp, N1p), jnp.float32),
                   jax.ShapeDtypeStruct((Mp, N2p), jnp.float32),
                   jax.ShapeDtypeStruct((Mp, N2p), jnp.float32)),
        grid_spec=pltpu.PrefetchScalarGridSpec(
            num_scalar_prefetch=0,
            grid=grid,
            in_specs=[
                pl.BlockSpec((bm, Kp), lambda i: (i, 0)),
                pl.BlockSpec((Kp, N1p), lambda i: (0, 0)),
                pl.BlockSpec((1, N1p), lambda i: (0, 0)),
                pl.BlockSpec((K2p, N2p), lambda i: (0, 0)),
                pl.BlockSpec((1, N2p), lambda i: (0, 0)),
                pl.BlockSpec((bm, N1p), lambda i: (i, 0)),
            ],
            out_specs=[
                pl.BlockSpec((bm, N1p), lambda i: (i, 0)),
                pl.BlockSpec((bm, N2p), lambda i: (i, 0)),
                pl.BlockSpec((bm, N2p), lambda i: (i, 0)),
            ],
        ),
        compiler_params=pltpu.CompilerParams(
            dimension_semantics=("parallel",)),
    )(x_p, w1, b1, w2, b2, mask_p)
    return h1, h2, logp


# ----------------------------------------------------------------------------
# Conv / pooling / stats glue
# ----------------------------------------------------------------------------
def _im2col(x_nhwc, kh, kw):
    """x: NHWC, stride=1, padding=0 -> [N*Ho*Wo, kh*kw*C], row = (i*kw+j)*C+c."""
    N, H, W, C = x_nhwc.shape
    Ho, Wo = H - kh + 1, W - kw + 1
    cols = []
    for i in range(kh):
        for j in range(kw):
            cols.append(x_nhwc[:, i:i + Ho, j:j + Wo, :])
    col = jnp.stack(cols, axis=-2)                       # (N, Ho, Wo, kh*kw, C)
    return col.reshape(N * Ho * Wo, kh * kw * C), (N, Ho, Wo)


def _maxpool2(x_nhwc):
    N, H, W, C = x_nhwc.shape
    return x_nhwc.reshape(N, H // 2, 2, W // 2, 2, C).max(axis=(2, 4))


def _stats(t):
    """(torch.mean(t), torch.std(t)) -- torch.std is unbiased (ddof=1).
    Single-pass sum + sum-of-squares so XLA reads the tensor once."""
    t = t.astype(jnp.float32)
    n = t.size
    s = jnp.sum(t)
    ss = jnp.sum(t * t)
    mean = s / n
    var = jnp.maximum(ss - s * s / n, 0.0) / (n - 1)
    return mean, jnp.sqrt(var)


# ----------------------------------------------------------------------------
# Parameter init: weights pre-transposed / pre-padded / bf16-cast ONCE
# ----------------------------------------------------------------------------
def _prep_matmul_weight(wmat_kn, b):
    K, Nout = wmat_kn.shape
    Kp, Np = _round_up(K, LANE), _round_up(Nout, LANE)
    w_pad = jnp.pad(wmat_kn.astype(jnp.bfloat16), ((0, Kp - K), (0, Np - Nout)))
    b_pad = jnp.pad(b.astype(jnp.float32).reshape(1, Nout), ((0, 0), (0, Np - Nout)))
    return w_pad, b_pad


def prep_conv(w_oihw, b):
    # PyTorch conv weight (Cout,Cin,kh,kw) -> im2col matrix (kh*kw*Cin, Cout)
    Cout, Cin, kh, kw = w_oihw.shape
    wmat = jnp.transpose(w_oihw, (2, 3, 1, 0)).reshape(kh * kw * Cin, Cout)
    return _prep_matmul_weight(wmat, b)


def prep_linear(w_out_in, b):
    # PyTorch Linear weight (out, in) -> (in, out)
    return _prep_matmul_weight(w_out_in.T, b)


def init_params(key):
    ks = iter(jax.random.split(key, 8))

    def conv_w(cout, cin, k):
        fan = cin * k * k
        w = jax.random.normal(next(ks), (cout, cin, k, k), jnp.float32) / math.sqrt(fan)
        b = jax.random.normal(next(ks), (cout,), jnp.float32) * 0.01
        return w, b

    def lin_w(nout, nin):
        w = jax.random.normal(next(ks), (nout, nin), jnp.float32) / math.sqrt(nin)
        b = jax.random.normal(next(ks), (nout,), jnp.float32) * 0.01
        return w, b

    return {
        'conv1': prep_conv(*conv_w(CONV1_OUT, 1, 5)),
        'conv2': prep_conv(*conv_w(CONV2_OUT, CONV1_OUT, 5)),
        'fc1': prep_linear(*lin_w(FC1_OUT, FC1_IN)),
        'fc2': prep_linear(*lin_w(FC2_OUT, FC1_OUT)),
    }


# ----------------------------------------------------------------------------
# Forward pass (mirrors CNN_stat.forward, returns (log_softmax, stats x1..x11))
# ----------------------------------------------------------------------------
def cnn_stat_forward(params, x_nchw, *, training=False, dropout_key=None):
    stats = {}
    if training:
        k_drop2d, k_drop = jax.random.split(dropout_key)

    # NCHW -> NHWC (C on lanes); cast to bf16 BEFORE the 25x im2col expansion
    x = jnp.transpose(x_nchw, (0, 2, 3, 1)).astype(jnp.bfloat16)

    # conv1 (k=5, stride=1, pad=0)
    cols, (N, Ho, Wo) = _im2col(x, 5, 5)
    w, b = params['conv1']
    x = pallas_matmul_bias(cols, w, b, CONV1_OUT).reshape(N, Ho, Wo, CONV1_OUT)
    stats['x1'] = _stats(x)
    x = _maxpool2(x);                    stats['x2'] = _stats(x)
    x = jnp.maximum(x, 0.0);             stats['x3'] = _stats(x)

    # conv2
    cols, (N, Ho, Wo) = _im2col(x.astype(jnp.bfloat16), 5, 5)
    w, b = params['conv2']
    x = pallas_matmul_bias(cols, w, b, CONV2_OUT).reshape(N, Ho, Wo, CONV2_OUT)
    stats['x4'] = _stats(x)
    if training:                                          # nn.Dropout2d(p=0.5)
        keep = jax.random.bernoulli(k_drop2d, 0.5, (N, 1, 1, x.shape[-1]))
        x = jnp.where(keep, x * 2.0, 0.0)
    stats['x5'] = _stats(x)
    x = _maxpool2(x);                    stats['x6'] = _stats(x)
    x = jnp.maximum(x, 0.0);             stats['x7'] = _stats(x)

    # flatten in PyTorch NCHW order: x.view(-1, 320)
    x = jnp.transpose(x, (0, 3, 1, 2)).reshape(x.shape[0], -1)
    M = x.shape[0]

    # dropout mask for F.dropout(p=0.5) between relu(fc1) and fc2
    if training:
        keep = jax.random.bernoulli(k_drop, 0.5, (M, FC1_OUT))
        mask_valid = keep.astype(jnp.float32) * 2.0
    else:
        mask_valid = jnp.ones((M, FC1_OUT), jnp.float32)

    # fused fc1 -> relu -> dropout -> fc2 -> log_softmax (single Pallas kernel)
    w1, b1 = params['fc1']
    w2, b2 = params['fc2']
    h1, h2, logp = pallas_fc_tail(x, w1, b1, w2, b2, mask_valid)

    h1v = h1[:M, :FC1_OUT]
    stats['x8'] = _stats(h1v)
    r = jnp.maximum(h1v, 0.0)
    stats['x9'] = _stats(r)
    stats['x10'] = _stats(r * mask_valid)
    stats['x11'] = _stats(h2[:M, :FC2_OUT])

    return logp[:M, :FC2_OUT], stats


# ----------------------------------------------------------------------------
if __name__ == "__main__":
    key = jax.random.PRNGKey(0)
    k_param, k_input = jax.random.split(key)

    params = init_params(k_param)
    # MNIST-shaped input implied by fc1's 320 = 20*4*4 features: [N, 1, 28, 28]
    x = jax.random.normal(k_input, (2, 1, 28, 28), jnp.float32)

    fwd = jax.jit(lambda p, xx: cnn_stat_forward(p, xx, training=False))
    logp, stats = fwd(params, x)
    jax.block_until_ready((logp, stats))

    assert logp.shape == (2, 10)
    assert bool(jnp.all(jnp.isfinite(logp)))
    # rows of exp(log_softmax) must sum to 1
    assert bool(jnp.allclose(jnp.sum(jnp.exp(logp), axis=-1), 1.0, atol=1e-3))
    assert len(stats) == 11
    for name in (f"x{i}" for i in range(1, 12)):
        m, s = stats[name]
        assert bool(jnp.isfinite(m)) and bool(jnp.isfinite(s))

    print("KERNEL_OK")
</pallas_src>

<mosaic_0001>
module attributes {stable_mosaic.version = 11 : i64} {
  func.func @_matmul_bias_kernel(%arg0: i32, %arg1: memref<512x128xbf16, #tpu.memory_space<vmem>>, %arg2: memref<128x128xbf16, #tpu.memory_space<vmem>>, %arg3: memref<1x128xf32, #tpu.memory_space<vmem>>, %arg4: memref<512x128xf32, #tpu.memory_space<vmem>>) attributes {dimension_semantics = [#tpu.dimension_semantics<parallel>], iteration_bounds = array<i64: 3>, scalar_prefetch = 0 : i64, scratch_operands = 0 : i64, tpu.core_type = #tpu.core_type<tc>, window_params = [{transform_indices = @transform_0, window_bounds = array<i64: 512, 128>}, {pipeline_mode = #tpu.pipeline_mode<synchronous>, transform_indices = @transform_1, window_bounds = array<i64: 128, 128>}, {pipeline_mode = #tpu.pipeline_mode<synchronous>, transform_indices = @transform_2, window_bounds = array<i64: 1, 128>}, {transform_indices = @transform_3, window_bounds = array<i64: 512, 128>}]} {
    %c0 = arith.constant 0 : index
    %c0_0 = arith.constant 0 : index
    %0 = vector.load %arg1[%c0, %c0_0] : memref<512x128xbf16, #tpu.memory_space<vmem>>, vector<512x128xbf16>
    %c0_1 = arith.constant 0 : index
    %c0_2 = arith.constant 0 : index
    %1 = vector.load %arg2[%c0_1, %c0_2] : memref<128x128xbf16, #tpu.memory_space<vmem>>, vector<128x128xbf16>
    %cst = arith.constant dense<0.000000e+00> : vector<512x128xf32>
    %2 = tpu.matmul %0, %1, %cst {dimension_numbers = #tpu.dot_dimension_numbers<[1], [0], [0], [1], [0, 0, 1, 1], [], []>} : vector<512x128xbf16>, vector<128x128xbf16>, vector<512x128xf32> -> vector<512x128xf32>
    %c0_3 = arith.constant 0 : index
    %c0_4 = arith.constant 0 : index
    %3 = vector.load %arg3[%c0_3, %c0_4] : memref<1x128xf32, #tpu.memory_space<vmem>>, vector<1x128xf32>
    %4 = vector.broadcast %3 : vector<1x128xf32> to vector<512x128xf32>
    %5 = arith.addf %2, %4 : vector<512x128xf32>
    %c0_5 = arith.constant 0 : index
    %c0_6 = arith.constant 0 : index
    %6 = vector.load %arg4[%c0_5, %c0_6] : memref<512x128xf32, #tpu.memory_space<vmem>>, vector<512x128xf32>
    tpu.vector_store %arg4[%c0_5, %c0_6], %5 {strides = array<i32>} : memref<512x128xf32, #tpu.memory_space<vmem>>, vector<512x128xf32>,
    return
  }
  func.func @transform_0(%arg0: i32) -> (i32, i32) {
    %c0_i32 = arith.constant 0 : i32
    %c0_i32_0 = arith.constant 0 : i32
    return %arg0, %c0_i32 : i32, i32
  }
  func.func @transform_1(%arg0: i32) -> (i32, i32) {
    %c0_i32 = arith.constant 0 : i32
    %c0_i32_0 = arith.constant 0 : i32
    %c0_i32_1 = arith.constant 0 : i32
    return %c0_i32, %c0_i32_0 : i32, i32
  }
  func.func @transform_2(%arg0: i32) -> (i32, i32) {
    %c0_i32 = arith.constant 0 : i32
    %c0_i32_0 = arith.constant 0 : i32
    %c0_i32_1 = arith.constant 0 : i32
    return %c0_i32, %c0_i32_0 : i32, i32
  }
  func.func @transform_3(%arg0: i32) -> (i32, i32) {
    %c0_i32 = arith.constant 0 : i32
    %c0_i32_0 = arith.constant 0 : i32
    return %arg0, %c0_i32 : i32, i32
  }
}

module attributes {stable_mosaic.version = 11 : i64} {
  func.func @_matmul_bias_kernel(%arg0: i32, %arg1: memref<64x256xbf16, #tpu.memory_space<vmem>>, %arg2: memref<256x128xbf16, #tpu.memory_space<vmem>>, %arg3: memref<1x128xf32, #tpu.memory_space<vmem>>, %arg4: memref<64x128xf32, #tpu.memory_space<vmem>>) attributes {dimension_semantics = [#tpu.dimension_semantics<parallel>], iteration_bounds = array<i64: 2>, scalar_prefetch = 0 : i64, scratch_operands = 0 : i64, tpu.core_type = #tpu.core_type<tc>, window_params = [{transform_indices = @transform_0, window_bounds = array<i64: 64, 256>}, {pipeline_mode = #tpu.pipeline_mode<synchronous>, transform_indices = @transform_1, window_bounds = array<i64: 256, 128>}, {pipeline_mode = #tpu.pipeline_mode<synchronous>, transform_indices = @transform_2, window_bounds = array<i64: 1, 128>}, {transform_indices = @transform_3, window_bounds = array<i64: 64, 128>}]} {
    %c0 = arith.constant 0 : index
    %c0_0 = arith.constant 0 : index
    %0 = vector.load %arg1[%c0, %c0_0] : memref<64x256xbf16, #tpu.memory_space<vmem>>, vector<64x256xbf16>
    %c0_1 = arith.constant 0 : index
    %c0_2 = arith.constant 0 : index
    %1 = vector.load %arg2[%c0_1, %c0_2] : memref<256x128xbf16, #tpu.memory_space<vmem>>, vector<256x128xbf16>
    %cst = arith.constant dense<0.000000e+00> : vector<64x128xf32>
    %2 = tpu.matmul %0, %1, %cst {dimension_numbers = #tpu.dot_dimension_numbers<[1], [0], [0], [1], [0, 0, 1, 1], [], []>} : vector<64x256xbf16>, vector<256x128xbf16>, vector<64x128xf32> -> vector<64x128xf32>
    %c0_3 = arith.constant 0 : index
    %c0_4 = arith.constant 0 : index
    %3 = vector.load %arg3[%c0_3, %c0_4] : memref<1x128xf32, #tpu.memory_space<vmem>>, vector<1x128xf32>
    %4 = vector.broadcast %3 : vector<1x128xf32> to vector<64x128xf32>
    %5 = arith.addf %2, %4 : vector<64x128xf32>
    %c0_5 = arith.constant 0 : index
    %c0_6 = arith.constant 0 : index
    %6 = vector.load %arg4[%c0_5, %c0_6] : memref<64x128xf32, #tpu.memory_space<vmem>>, vector<64x128xf32>
    tpu.vector_store %arg4[%c0_5, %c0_6], %5 {strides = array<i32>} : memref<64x128xf32, #tpu.memory_space<vmem>>, vector<64x128xf32>,
    return
  }
  func.func @transform_0(%arg0: i32) -> (i32, i32) {
    %c0_i32 = arith.constant 0 : i32
    %c0_i32_0 = arith.constant 0 : i32
    return %arg0, %c0_i32 : i32, i32
  }
  func.func @transform_1(%arg0: i32) -> (i32, i32) {
    %c0_i32 = arith.constant 0 : i32
    %c0_i32_0 = arith.constant 0 : i32
    %c0_i32_1 = arith.constant 0 : i32
    return %c0_i32, %c0_i32_0 : i32, i32
  }
  func.func @transform_2(%arg0: i32) -> (i32, i32) {
    %c0_i32 = arith.constant 0 : i32
    %c0_i32_0 = arith.constant 0 : i32
    %c0_i32_1 = arith.constant 0 : i32
    return %c0_i32, %c0_i32_0 : i32, i32
  }
  func.func @transform_3(%arg0: i32) -> (i32, i32) {
    %c0_i32 = arith.constant 0 : i32
    %c0_i32_0 = arith.constant 0 : i32
    return %arg0, %c0_i32 : i32, i32
  }
}

module attributes {stable_mosaic.version = 11 : i64} {
  func.func @_fc_tail_kernel(%arg0: i32, %arg1: memref<16x384xbf16, #tpu.memory_space<vmem>>, %arg2: memref<384x128xbf16, #tpu.memory_space<vmem>>, %arg3: memref<1x128xf32, #tpu.memory_space<vmem>>, %arg4: memref<128x128xbf16, #tpu.memory_space<vmem>>, %arg5: memref<1x128xf32, #tpu.memory_space<vmem>>, %arg6: memref<16x128xf32, #tpu.memory_space<vmem>>, %arg7: memref<16x128xf32, #tpu.memory_space<vmem>>, %arg8: memref<16x128xf32, #tpu.memory_space<vmem>>, %arg9: memref<16x128xf32, #tpu.memory_space<vmem>>) attributes {dimension_semantics = [#tpu.dimension_semantics<parallel>], iteration_bounds = array<i64: 1>, scalar_prefetch = 0 : i64, scratch_operands = 0 : i64, tpu.core_type = #tpu.core_type<tc>, window_params = [{transform_indices = @transform_0, window_bounds = array<i64: 16, 384>}, {pipeline_mode = #tpu.pipeline_mode<synchronous>, transform_indices = @transform_1, window_bounds = array<i64: 384, 128>}, {pipeline_mode = #tpu.pipeline_mode<synchronous>, transform_indices = @transform_2, window_bounds = array<i64: 1, 128>}, {pipeline_mode = #tpu.pipeline_mode<synchronous>, transform_indices = @transform_3, window_bounds = array<i64: 128, 128>}, {pipeline_mode = #tpu.pipeline_mode<synchronous>, transform_indices = @transform_4, window_bounds = array<i64: 1, 128>}, {transform_indices = @transform_5, window_bounds = array<i64: 16, 128>}, {transform_indices = @transform_6, window_bounds = array<i64: 16, 128>}, {transform_indices = @transform_7, window_bounds = array<i64: 16, 128>}, {transform_indices = @transform_8, window_bounds = array<i64: 16, 128>}]} {
    %c0 = arith.constant 0 : index
    %c0_0 = arith.constant 0 : index
    %0 = vector.load %arg1[%c0, %c0_0] : memref<16x384xbf16, #tpu.memory_space<vmem>>, vector<16x384xbf16>
    %c0_1 = arith.constant 0 : index
    %c0_2 = arith.constant 0 : index
    %1 = vector.load %arg2[%c0_1, %c0_2] : memref<384x128xbf16, #tpu.memory_space<vmem>>, vector<384x128xbf16>
    %cst = arith.constant dense<0.000000e+00> : vector<16x128xf32>
    %2 = tpu.matmul %0, %1, %cst {dimension_numbers = #tpu.dot_dimension_numbers<[1], [0], [0], [1], [0, 0, 1, 1], [], []>} : vector<16x384xbf16>, vector<384x128xbf16>, vector<16x128xf32> -> vector<16x128xf32>
    %c0_3 = arith.constant 0 : index
    %c0_4 = arith.constant 0 : index
    %3 = vector.load %arg3[%c0_3, %c0_4] : memref<1x128xf32, #tpu.memory_space<vmem>>, vector<1x128xf32>
    %4 = vector.broadcast %3 : vector<1x128xf32> to vector<16x128xf32>
    %5 = arith.addf %2, %4 : vector<16x128xf32>
    %c0_5 = arith.constant 0 : index
    %c0_6 = arith.constant 0 : index
    %6 = vector.load %arg7[%c0_5, %c0_6] : memref<16x128xf32, #tpu.memory_space<vmem>>, vector<16x128xf32>
    tpu.vector_store %arg7[%c0_5, %c0_6], %5 {strides = array<i32>} : memref<16x128xf32, #tpu.memory_space<vmem>>, vector<16x128xf32>,
    %cst_7 = arith.constant 0.000000e+00 : f32
    %7 = vector.broadcast %cst_7 : f32 to vector<16x128xf32>
    %8 = arith.maximumf %5, %7 : vector<16x128xf32>
    %c0_8 = arith.constant 0 : index
    %c0_9 = arith.constant 0 : index
    %9 = vector.load %arg6[%c0_8, %c0_9] : memref<16x128xf32, #tpu.memory_space<vmem>>, vector<16x128xf32>
    %10 = arith.mulf %8, %9 : vector<16x128xf32>
    %11 = arith.truncf %10 : vector<16x128xf32> to vector<16x128xbf16>
    %c0_10 = arith.constant 0 : index
    %c0_11 = arith.constant 0 : index
    %12 = vector.load %arg4[%c0_10, %c0_11] : memref<128x128xbf16, #tpu.memory_space<vmem>>, vector<128x128xbf16>
    %cst_12 = arith.constant dense<0.000000e+00> : vector<16x128xf32>
    %13 = tpu.matmul %11, %12, %cst_12 {dimension_numbers = #tpu.dot_dimension_numbers<[1], [0], [0], [1], [0, 0, 1, 1], [], []>} : vector<16x128xbf16>, vector<128x128xbf16>, vector<16x128xf32> -> vector<16x128xf32>
    %c0_13 = arith.constant 0 : index
    %c0_14 = arith.constant 0 : index
    %14 = vector.load %arg5[%c0_13, %c0_14] : memref<1x128xf32, #tpu.memory_space<vmem>>, vector<1x128xf32>
    %15 = vector.broadcast %14 : vector<1x128xf32> to vector<16x128xf32>
    %16 = arith.addf %13, %15 : vector<16x128xf32>
    %c0_15 = arith.constant 0 : index
    %c0_16 = arith.constant 0 : index
    %17 = vector.load %arg8[%c0_15, %c0_16] : memref<16x128xf32, #tpu.memory_space<vmem>>, vector<16x128xf32>
    tpu.vector_store %arg8[%c0_15, %c0_16], %16 {strides = array<i32>} : memref<16x128xf32, #tpu.memory_space<vmem>>, vector<16x128xf32>,
    %18 = tpu.iota {dimensions = array<i32: 1>} : vector<16x128xi32>
    %c10_i32 = arith.constant 10 : i32
    %19 = vector.broadcast %c10_i32 : i32 to vector<16x128xi32>
    %20 = arith.cmpi slt, %18, %19 : vector<16x128xi32>
    %cst_17 = arith.constant -1.000000e+30 : f32
    %21 = vector.broadcast %cst_17 : f32 to vector<16x128xf32>
    %22 = arith.select %20, %16, %21 : vector<16x128xi1>, vector<16x128xf32>
    %cst_18 = arith.constant dense<0xFF800000> : vector<16xf32>
    %23 = vector.multi_reduction <maximumf>, %22, %cst_18 [1] : vector<16x128xf32> to vector<16xf32>
    %24 = vector.shape_cast %23 : vector<16xf32> to vector<16x1xf32>
    %25 = vector.broadcast %24 : vector<16x1xf32> to vector<16x128xf32>
    %26 = arith.subf %16, %25 : vector<16x128xf32>
    %27 = math.exp %26 : vector<16x128xf32>
    %cst_19 = arith.constant 0.000000e+00 : f32
    %28 = vector.broadcast %cst_19 : f32 to vector<16x128xf32>
    %29 = arith.select %20, %27, %28 : vector<16x128xi1>, vector<16x128xf32>
    %cst_20 = arith.constant dense<0.000000e+00> : vector<16xf32>
    %30 = vector.multi_reduction <add>, %29, %cst_20 [1] : vector<16x128xf32> to vector<16xf32>
    %31 = vector.shape_cast %30 : vector<16xf32> to vector<16x1xf32>
    %32 = math.log %31 : vector<16x1xf32>
    %33 = arith.addf %32, %24 : vector<16x1xf32>
    %34 = vector.broadcast %33 : vector<16x1xf32> to vector<16x128xf32>
    %35 = arith.subf %16, %34 : vector<16x128xf32>
    %c0_21 = arith.constant 0 : index
    %c0_22 = arith.constant 0 : index
    %36 = vector.load %arg9[%c0_21, %c0_22] : memref<16x128xf32, #tpu.memory_space<vmem>>, vector<16x128xf32>
    tpu.vector_store %arg9[%c0_21, %c0_22], %35 {strides = array<i32>} : memref<16x128xf32, #tpu.memory_space<vmem>>, vector<16x128xf32>,
    return
  }
  func.func @transform_0(%arg0: i32) -> (i32, i32) {
    %c0_i32 = arith.constant 0 : i32
    %c0_i32_0 = arith.constant 0 : i32
    return %arg0, %c0_i32 : i32, i32
  }
  func.func @transform_1(%arg0: i32) -> (i32, i32) {
    %c0_i32 = arith.constant 0 : i32
    %c0_i32_0 = arith.constant 0 : i32
    %c0_i32_1 = arith.constant 0 : i32
    return %c0_i32, %c0_i32_0 : i32, i32
  }
  func.func @transform_2(%arg0: i32) -> (i32, i32) {
    %c0_i32 = arith.constant 0 : i32
    %c0_i32_0 = arith.constant 0 : i32
    %c0_i32_1 = arith.constant 0 : i32
    return %c0_i32, %c0_i32_0 : i32, i32
  }
  func.func @transform_3(%arg0: i32) -> (i32, i32) {
    %c0_i32 = arith.constant 0 : i32
    %c0_i32_0 = arith.constant 0 : i32
    %c0_i32_1 = arith.constant 0 : i32
    return %c0_i32, %c0_i32_0 : i32, i32
  }
  func.func @transform_4(%arg0: i32) -> (i32, i32) {
    %c0_i32 = arith.constant 0 : i32
    %c0_i32_0 = arith.constant 0 : i32
    %c0_i32_1 = arith.constant 0 : i32
    return %c0_i32, %c0_i32_0 : i32, i32
  }
  func.func @transform_5(%arg0: i32) -> (i32, i32) {
    %c0_i32 = arith.constant 0 : i32
    %c0_i32_0 = arith.constant 0 : i32
    return %arg0, %c0_i32 : i32, i32
  }
  func.func @transform_6(%arg0: i32) -> (i32, i32) {
    %c0_i32 = arith.constant 0 : i32
    %c0_i32_0 = arith.constant 0 : i32
    return %arg0, %c0_i32 : i32, i32
  }
  func.func @transform_7(%arg0: i32) -> (i32, i32) {
    %c0_i32 = arith.constant 0 : i32
    %c0_i32_0 = arith.constant 0 : i32
    return %arg0, %c0_i32 : i32, i32
  }
  func.func @transform_8(%arg0: i32) -> (i32, i32) {
    %c0_i32 = arith.constant 0 : i32
    %c0_i32_0 = arith.constant 0 : i32
    return %arg0, %c0_i32 : i32, i32
  }
}

</mosaic_0001>

<llo_original>
// kernel: _lambda_.3
$region0: #{_lambda_.3}
  #allocation0 [shape = 'u32[]', space=smem, size = 0x4, offset = 0x4, fixed_abs, tag = 'smem constant byte address 0x4 - core index']
  #allocation1 [shape = 'u32[144,128]{1,0:T(1,128)}', space=vmem, size = 0x12000, scoped, tag = 'internal scratch']
  %s0 = inlined_call_operand.vmem [shape: bf16[1536,128], index: 0, kind: input, shape index: {}]
  %s1 = inlined_call_operand.vmem [shape: bf16[128,128], index: 1, kind: input, shape index: {}]
  %s2 = inlined_call_operand.vmem [shape: f32[1,128], index: 2, kind: input, shape index: {}]
  %s3 = inlined_call_operand.vmem [shape: f32[1536,128], index: 3, kind: output, shape index: {}]
  %s4 = sld [smem:[#allocation0]]
  $region45: #{_lambda_.3} parent=0
    _
  %s6 = ssub.s32 1, %s4
  %s7 = scalar_select 0, %s6, %s4
  loop: start=0, step=1, limit=5
  $region2: #{_lambda_.3} parent=0 // loop_pre_header
    _
  $region3: #{_lambda_.3} parent=0 // loop_header
    %s9 = sphi 0, %s13
    %p10 = scmp.ge.s32.totalorder %s9, 5
    %s19 = sphi 0, %s21
    %s22 = sphi 0, %s19
    %s23 = sphi 0, %s22
    %s39 = sphi 0, %s23
    %s43 = sphi 0, %s43
    %s45 = sphi 0, %s43
    %s46 = sphi 0, %s45
    %s60 = sphi 0, %s46
    %s64 = sphi 0, %s64
    %s66 = sphi 0, %s64
    %s67 = sphi 0, %s66
    %s81 = sphi 0, %s67
    %s87 = sphi 0, %s89
    %s90 = sphi 0, %s87
    %s91 = sphi 0, %s90
    %s107 = sphi 0, %s91
  $region4: #{_lambda_.3} parent=0 // loop_header_branch
    %12 = sbr.rel (%p10) target = $region8
  $region5: #{_lambda_.3} parent=0 // loop_body
    %s14 = ssub.s32 %s9, 1
    %s15 = ssub.s32 %s9, 2
    %s16 = sadd.s32 %s9, 1
    %s17 = ssub.s32 %s9, %s16
    %p18 = scmp.eq.s32.totalorder %s17, 0
    %s20 = sadd.s32 %s19, 1
    %s21 = scalar_select %p18, %s19, %s20
    %p24 = pneg %p18
    %p25 = scmp.eq.s32.totalorder %s9, 2
    %p26 = por %p24, %p25
    %p27 = scmp.ne.s32.totalorder %s19, %s22
    %p28 = scmp.eq.s32.totalorder %s9, 0
    %p29 = por %p27, %p28
    %p30 = scmp.ne.s32.totalorder %s19, %s22
    %p31 = scmp.eq.s32.totalorder %s14, 2
    %p32 = por %p30, %p31
    %p33 = scmp.ne.s32.totalorder %s22, %s23
    %p34 = scmp.eq.s32.totalorder %s14, 0
    %p35 = por %p33, %p34
    %p36 = scmp.ne.s32.totalorder %s22, %s23
    %p37 = scmp.eq.s32.totalorder %s15, 2
    %p38 = por %p36, %p37
    %p40 = scmp.ne.s32.totalorder %s23, %s39
    %p41 = scmp.eq.s32.totalorder %s15, 0
    %p42 = por %p40, %p41
    %s44 = sadd.s32 %s43, 1
    %p47 = scmp.eq.s32.totalorder %s9, 2
    %p48 = scmp.ne.s32.totalorder %s43, %s45
    %p49 = scmp.eq.s32.totalorder %s9, 0
    %p50 = por %p48, %p49
    %p51 = scmp.ne.s32.totalorder %s43, %s45
    %p52 = scmp.eq.s32.totalorder %s14, 2
    %p53 = por %p51, %p52
    %p54 = scmp.ne.s32.totalorder %s45, %s46
    %p55 = scmp.eq.s32.totalorder %s14, 0
    %p56 = por %p54, %p55
    %p57 = scmp.ne.s32.totalorder %s45, %s46
    %p58 = scmp.eq.s32.totalorder %s15, 2
    %p59 = por %p57, %p58
    %p61 = scmp.ne.s32.totalorder %s46, %s60
    %p62 = scmp.eq.s32.totalorder %s15, 0
    %p63 = por %p61, %p62
    %s65 = sadd.s32 %s64, 1
    %p68 = scmp.eq.s32.totalorder %s9, 2
    %p69 = scmp.ne.s32.totalorder %s64, %s66
    %p70 = scmp.eq.s32.totalorder %s9, 0
    %p71 = por %p69, %p70
    %p72 = scmp.ne.s32.totalorder %s64, %s66
    %p73 = scmp.eq.s32.totalorder %s14, 2
    %p74 = por %p72, %p73
    %p75 = scmp.ne.s32.totalorder %s66, %s67
    %p76 = scmp.eq.s32.totalorder %s14, 0
    %p77 = por %p75, %p76
    %p78 = scmp.ne.s32.totalorder %s66, %s67
    %p79 = scmp.eq.s32.totalorder %s15, 2
    %p80 = por %p78, %p79
    %p82 = scmp.ne.s32.totalorder %s67, %s81
    %p83 = scmp.eq.s32.totalorder %s15, 0
    %p84 = por %p82, %p83
    %s85 = ssub.s32 %s9, %s16
    %p86 = scmp.eq.s32.totalorder %s85, 0
    %s88 = sadd.s32 %s87, 1
    %s89 = scalar_select %p86, %s87, %s88
    %p92 = pneg %p86
    %p93 = scmp.eq.s32.totalorder %s9, 2
    %p94 = por %p92, %p93
    %p95 = scmp.ne.s32.totalorder %s87, %s90
    %p96 = scmp.eq.s32.totalorder %s9, 0
    %p97 = por %p95, %p96
    %p98 = scmp.ne.s32.totalorder %s87, %s90
    %p99 = scmp.eq.s32.totalorder %s14, 2
    %p100 = por %p98, %p99
    %p101 = scmp.ne.s32.totalorder %s90, %s91
    %p102 = scmp.eq.s32.totalorder %s14, 0
    %p103 = por %p101, %p102
    %p104 = scmp.ne.s32.totalorder %s90, %s91
    %p105 = scmp.eq.s32.totalorder %s15, 2
    %p106 = por %p104, %p105
    %p108 = scmp.ne.s32.totalorder %s91, %s107
    %p109 = scmp.eq.s32.totalorder %s15, 0
    %p110 = por %p108, %p109
    %p111 = scmp.le.s32.totalorder 1, %s9
    %p112 = scmp.lt.s32.totalorder %s9, 4
    %p113 = pnand %p111, %p112
    %p114 = pneg %p113
    // Predicated region
    $region9: #{_lambda_.3} parent=5 // pred_check
      _
    $region10: #{_lambda_.3} parent=5 // pred_check_branch
      %116 = sbr.rel (%p113) target = $region12
    $region11: #{_lambda_.3} parent=5 // pred_region
      %s117 = ssub.s32 %s9, 1
      // Predicated region
      $region13: #{_lambda_.3} parent=11 // pred_check
        %p118 = pneg %p56
      $region14: #{_lambda_.3} parent=11 // pred_check_branch
        %120 = sbr.rel (%p118) target = $region16
      $region15: #{_lambda_.3} parent=11 // pred_region
        _
      $region16: #{_lambda_.3} parent=11 // pred_fallthru
        _
      // Predicated region
      $region17: #{_lambda_.3} parent=11 // pred_check
        %p121 = pneg %p77
      $region18: #{_lambda_.3} parent=11 // pred_check_branch
        %123 = sbr.rel (%p121) target = $region20
      $region19: #{_lambda_.3} parent=11 // pred_region
        _
      $region20: #{_lambda_.3} parent=11 // pred_fallthru
        _
    $region12: #{_lambda_.3} parent=5 // pred_fallthru
      _
    %p124 = scmp.lt.s32.totalorder %s9, 3
    // Predicated region
    $region21: #{_lambda_.3} parent=5 // pred_check
      %p125 = pneg %p124
    $region22: #{_lambda_.3} parent=5 // pred_check_branch
      %127 = sbr.rel (%p125) target = $region24
    $region23: #{_lambda_.3} parent=5 // pred_region
      // Predicated region
      $region25: #{_lambda_.3} parent=23 // pred_check
        %p128 = pneg %p29
      $region26: #{_lambda_.3} parent=23 // pred_check_branch
        %130 = sbr.rel (%p128) target = $region28
      $region27: #{_lambda_.3} parent=23 // pred_region
        %s131 = smul.u32 64, %s9
        %p132 = scmp.lt.s32.totalorder %s131, 191
        %s133 = scalar_select %p132, %s131, 191
        %s134 = smul.addr %s133, 4
        %s135 = scalar_lea.vmem %s0, %s134
        %s136 = smul.u32 64, %s9
      $region28: #{_lambda_.3} parent=23 // pred_fallthru
        _
    $region24: #{_lambda_.3} parent=5 // pred_fallthru
      _
    %p137 = scmp.le.s32.totalorder 1, %s9
    %p138 = scmp.lt.s32.totalorder %s9, 4
    %p139 = pnand %p137, %p138
    %p140 = pneg %p139
    // Predicated region
    $region29: #{_lambda_.3} parent=5 // pred_check
      _
    $region30: #{_lambda_.3} parent=5 // pred_check_branch
      %142 = sbr.rel (%p139) target = $region32
    $region31: #{_lambda_.3} parent=5 // pred_region
      %s143 = ssub.s32 %s9, 1
      %s144 = smul.u32 64, %s14
      %p145 = scmp.lt.s32.totalorder %s144, 191
      %s146 = scalar_select %p145, %s144, 191
      %s147 = smul.addr %s146, 4
      %s148 = scalar_lea.vmem %s0, %s147
      %p149 = pneg %p35
      %p150 = pneg %p32
      %p151 = pneg %p56
      %p152 = pneg %p53
      %p153 = pneg %p77
      %p154 = pneg %p74
      %p155 = pneg %p103
      %p156 = pneg %p100
      %s157 = smul.u32 64, %s14
      %p158 = scmp.lt.s32.totalorder %s157, 191
      %s159 = scalar_select %p158, %s157, 191
      %s160 = smul.addr %s159, 8
      %s161 = scalar_lea.vmem %s3, %s160
      %s162 = smul.u32 64, %s14
      %p163 = scmp.lt.s32.totalorder %s162, 191
      %s164 = scalar_select %p163, %s162, 191
      %s165 = smul.addr %s164, 4
      %s166 = scalar_lea.vmem %s0, %s165
      %s167 = smul.u32 64, %s14
      %s168 = smul.u32 64, %s14
      %p169 = scmp.lt.s32.totalorder %s168, 191
      %s170 = scalar_select %p169, %s168, 191
      %s171 = smul.addr %s170, 8
      %s172 = scalar_lea.vmem %s3, %s171
      %s173 = smul.u32 64, %s14
      %v175 = vld [vmem:[%s166] sm:$0xf]
      %v176 = vld [vmem:[%s166 + $0x4] sm:$0xf]
      %v177 = vld [vmem:[%s166 + $0x8] sm:$0xf]
      %v178 = vld [vmem:[%s166 + $0xc] sm:$0xf]
      %v179 = vld [vmem:[%s166 + $0x10] sm:$0xf]
      %v180 = vld [vmem:[%s166 + $0x14] sm:$0xf]
      %v181 = vld [vmem:[%s166 + $0x18] sm:$0xf]
      %v182 = vld [vmem:[%s166 + $0x1c] sm:$0xf]
      %v183 = vld [vmem:[%s166 + $0x20] sm:$0xf]
      %v184 = vld [vmem:[%s166 + $0x24] sm:$0xf]
      %v185 = vld [vmem:[%s166 + $0x28] sm:$0xf]
      %v186 = vld [vmem:[%s166 + $0x2c] sm:$0xf]
      %v187 = vld [vmem:[%s166 + $0x30] sm:$0xf]
      %v188 = vld [vmem:[%s166 + $0x34] sm:$0xf]
      %v189 = vld [vmem:[%s166 + $0x38] sm:$0xf]
      %v190 = vld [vmem:[%s166 + $0x3c] sm:$0xf]
      %v191 = vld [vmem:[%s166 + $0x40] sm:$0xf]
      %v192 = vld [vmem:[%s166 + $0x44] sm:$0xf]
      %v193 = vld [vmem:[%s166 + $0x48] sm:$0xf]
      %v194 = vld [vmem:[%s166 + $0x4c] sm:$0xf]
      %v195 = vld [vmem:[%s166 + $0x50] sm:$0xf]
      %v196 = vld [vmem:[%s166 + $0x54] sm:$0xf]
      %v197 = vld [vmem:[%s166 + $0x58] sm:$0xf]
      %v198 = vld [vmem:[%s166 + $0x5c] sm:$0xf]
      %v199 = vld [vmem:[%s166 + $0x60] sm:$0xf]
      %v200 = vld [vmem:[%s166 + $0x64] sm:$0xf]
      %v201 = vld [vmem:[%s166 + $0x68] sm:$0xf]
      %v202 = vld [vmem:[%s166 + $0x6c] sm:$0xf]
      %v203 = vld [vmem:[%s166 + $0x70] sm:$0xf]
      %v204 = vld [vmem:[%s166 + $0x74] sm:$0xf]
      %v205 = vld [vmem:[%s166 + $0x78] sm:$0xf]
      %v206 = vld [vmem:[%s166 + $0x7c] sm:$0xf]
      %v207 = vld [vmem:[%s166 + $0x80] sm:$0xf]
      %v208 = vld [vmem:[%s166 + $0x84] sm:$0xf]
      %v209 = vld [vmem:[%s166 + $0x88] sm:$0xf]
      %v210 = vld [vmem:[%s166 + $0x8c] sm:$0xf]
      %v211 = vld [vmem:[%s166 + $0x90] sm:$0xf]
      %v212 = vld [vmem:[%s166 + $0x94] sm:$0xf]
      %v213 = vld [vmem:[%s166 + $0x98] sm:$0xf]
      %v214 = vld [vmem:[%s166 + $0x9c] sm:$0xf]
      %v215 = vld [vmem:[%s166 + $0xa0] sm:$0xf]
      %v216 = vld [vmem:[%s166 + $0xa4] sm:$0xf]
      %v217 = vld [vmem:[%s166 + $0xa8] sm:$0xf]
      %v218 = vld [vmem:[%s166 + $0xac] sm:$0xf]
      %v219 = vld [vmem:[%s166 + $0xb0] sm:$0xf]
      %v220 = vld [vmem:[%s166 + $0xb4] sm:$0xf]
      %v221 = vld [vmem:[%s166 + $0xb8] sm:$0xf]
      %v222 = vld [vmem:[%s166 + $0xbc] sm:$0xf]
      %v223 = vld [vmem:[%s166 + $0xc0] sm:$0xf]
      %v224 = vld [vmem:[%s166 + $0xc4] sm:$0xf]
      %v225 = vld [vmem:[%s166 + $0xc8] sm:$0xf]
      %v226 = vld [vmem:[%s166 + $0xcc] sm:$0xf]
      %v227 = vld [vmem:[%s166 + $0xd0] sm:$0xf]
      %v228 = vld [vmem:[%s166 + $0xd4] sm:$0xf]
      %v229 = vld [vmem:[%s166 + $0xd8] sm:$0xf]
      %v230 = vld [vmem:[%s166 + $0xdc] sm:$0xf]
      %v231 = vld [vmem:[%s166 + $0xe0] sm:$0xf]
      %v232 = vld [vmem:[%s166 + $0xe4] sm:$0xf]
      %v233 = vld [vmem:[%s166 + $0xe8] sm:$0xf]
      %v234 = vld [vmem:[%s166 + $0xec] sm:$0xf]
      %v235 = vld [vmem:[%s166 + $0xf0] sm:$0xf]
      %v236 = vld [vmem:[%s166 + $0xf4] sm:$0xf]
      %v237 = vld [vmem:[%s166 + $0xf8] sm:$0xf]
      %v238 = vld [vmem:[%s166 + $0xfc] sm:$0xf]
      %v239 = vld [vmem:[%s1] sm:$0xf]
      %v240 = vld [vmem:[%s1 + $0x4] sm:$0xf]
      %v241 = vld [vmem:[%s1 + $0x8] sm:$0xf]
      %v242 = vld [vmem:[%s1 + $0xc] sm:$0xf]
      %v243 = vld [vmem:[%s1 + $0x10] sm:$0xf]
      %v244 = vld [vmem:[%s1 + $0x14] sm:$0xf]
      %v245 = vld [vmem:[%s1 + $0x18] sm:$0xf]
      %v246 = vld [vmem:[%s1 + $0x1c] sm:$0xf]
      %v247 = vld [vmem:[%s1 + $0x20] sm:$0xf]
      %v248 = vld [vmem:[%s1 + $0x24] sm:$0xf]
      %v249 = vld [vmem:[%s1 + $0x28] sm:$0xf]
      %v250 = vld [vmem:[%s1 + $0x2c] sm:$0xf]
      %v251 = vld [vmem:[%s1 + $0x30] sm:$0xf]
      %v252 = vld [vmem:[%s1 + $0x34] sm:$0xf]
      %v253 = vld [vmem:[%s1 + $0x38] sm:$0xf]
      %v254 = vld [vmem:[%s1 + $0x3c] sm:$0xf]
      %v255 = vld [vmem:[%s2] sm:$0x1]
      %v257 = vlaneseq
      %v258 = vshrl.u32 %v257, 7
      %v259 = vsub.s32 0, %v258
      %v260 = vrot.slane %v255, %v259
      %v326 = vunpack.c.l.b16 %v175
      %v327 = vunpack.c.l.b16 %v176
      %v328 = vunpack.c.l.b16 %v177
      %v329 = vunpack.c.l.b16 %v178
      %v330 = vunpack.c.l.b16 %v179
      %v331 = vunpack.c.l.b16 %v180
      %v332 = vunpack.c.l.b16 %v181
      %v333 = vunpack.c.l.b16 %v182
      %v334 = vunpack.c.l.b16 %v183
      %v335 = vunpack.c.l.b16 %v184
      %v336 = vunpack.c.l.b16 %v185
      %v337 = vunpack.c.l.b16 %v186
      %v338 = vunpack.c.l.b16 %v187
      %v339 = vunpack.c.l.b16 %v188
      %v340 = vunpack.c.l.b16 %v189
      %v341 = vunpack.c.l.b16 %v190
      %v342 = vunpack.c.l.b16 %v191
      %v343 = vunpack.c.l.b16 %v192
      %v344 = vunpack.c.l.b16 %v193
      %v345 = vunpack.c.l.b16 %v194
      %v346 = vunpack.c.l.b16 %v195
      %v347 = vunpack.c.l.b16 %v196
      %v348 = vunpack.c.l.b16 %v197
      %v349 = vunpack.c.l.b16 %v198
      %v350 = vunpack.c.l.b16 %v199
      %v351 = vunpack.c.l.b16 %v200
      %v352 = vunpack.c.l.b16 %v201
      %v353 = vunpack.c.l.b16 %v202
      %v354 = vunpack.c.l.b16 %v203
      %v355 = vunpack.c.l.b16 %v204
      %v356 = vunpack.c.l.b16 %v205
      %v357 = vunpack.c.l.b16 %v206
      %v358 = vunpack.c.l.b16 %v207
      %v359 = vunpack.c.l.b16 %v208
      %v360 = vunpack.c.l.b16 %v209
      %v361 = vunpack.c.l.b16 %v210
      %v362 = vunpack.c.l.b16 %v211
      %v363 = vunpack.c.l.b16 %v212
      %v364 = vunpack.c.l.b16 %v213
      %v365 = vunpack.c.l.b16 %v214
      %v366 = vunpack.c.l.b16 %v215
      %v367 = vunpack.c.l.b16 %v216
      %v368 = vunpack.c.l.b16 %v217
      %v369 = vunpack.c.l.b16 %v218
      %v370 = vunpack.c.l.b16 %v219
      %v371 = vunpack.c.l.b16 %v220
      %v372 = vunpack.c.l.b16 %v221
      %v373 = vunpack.c.l.b16 %v222
      %v374 = vunpack.c.l.b16 %v223
      %v375 = vunpack.c.l.b16 %v224
      %v376 = vunpack.c.l.b16 %v225
      %v377 = vunpack.c.l.b16 %v226
      %v378 = vunpack.c.l.b16 %v227
      %v379 = vunpack.c.l.b16 %v228
      %v380 = vunpack.c.l.b16 %v229
      %v381 = vunpack.c.l.b16 %v230
      %v382 = vunpack.c.l.b16 %v231
      %v383 = vunpack.c.l.b16 %v232
      %v384 = vunpack.c.l.b16 %v233
      %v385 = vunpack.c.l.b16 %v234
      %v386 = vunpack.c.l.b16 %v235
      %v387 = vunpack.c.l.b16 %v236
      %v388 = vunpack.c.l.b16 %v237
      %v389 = vunpack.c.l.b16 %v238
      %v390 = vpack.c.b16 %v327, %v326
      %v391 = vpack.c.b16 %v329, %v328
      %v392 = vpack.c.b16 %v331, %v330
      %v393 = vpack.c.b16 %v333, %v332
      %v394 = vpack.c.b16 %v335, %v334
      %v395 = vpack.c.b16 %v337, %v336
      %v396 = vpack.c.b16 %v339, %v338
      %v397 = vpack.c.b16 %v341, %v340
      %v398 = vpack.c.b16 %v343, %v342
      %v399 = vpack.c.b16 %v345, %v344
      %v400 = vpack.c.b16 %v347, %v346
      %v401 = vpack.c.b16 %v349, %v348
      %v402 = vpack.c.b16 %v351, %v350
      %v403 = vpack.c.b16 %v353, %v352
      %v404 = vpack.c.b16 %v355, %v354
      %v405 = vpack.c.b16 %v357, %v356
      %v406 = vpack.c.b16 %v359, %v358
      %v407 = vpack.c.b16 %v361, %v360
      %v408 = vpack.c.b16 %v363, %v362
      %v409 = vpack.c.b16 %v365, %v364
      %v410 = vpack.c.b16 %v367, %v366
      %v411 = vpack.c.b16 %v369, %v368
      %v412 = vpack.c.b16 %v371, %v370
      %v413 = vpack.c.b16 %v373, %v372
      %v414 = vpack.c.b16 %v375, %v374
      %v415 = vpack.c.b16 %v377, %v376
      %v416 = vpack.c.b16 %v379, %v378
      %v417 = vpack.c.b16 %v381, %v380
      %v418 = vpack.c.b16 %v383, %v382
      %v419 = vpack.c.b16 %v385, %v384
      %v420 = vpack.c.b16 %v387, %v386
      %v421 = vpack.c.b16 %v389, %v388
      %v470 = vunpack.c.l.b16 %v239
      %v471 = vunpack.c.l.b16 %v240
      %v472 = vunpack.c.l.b16 %v241
      %v473 = vunpack.c.l.b16 %v242
      %v474 = vunpack.c.l.b16 %v243
      %v475 = vunpack.c.l.b16 %v244
      %v476 = vunpack.c.l.b16 %v245
      %v477 = vunpack.c.l.b16 %v246
      %v478 = vunpack.c.l.b16 %v247
      %v479 = vunpack.c.l.b16 %v248
      %v480 = vunpack.c.l.b16 %v249
      %v481 = vunpack.c.l.b16 %v250
      %v482 = vunpack.c.l.b16 %v251
      %v483 = vunpack.c.l.b16 %v252
      %v484 = vunpack.c.l.b16 %v253
      %v485 = vunpack.c.l.b16 %v254
      %v486 = vpack.c.b16 %v471, %v470
      %v487 = vpack.c.b16 %v473, %v472
      %v488 = vpack.c.b16 %v475, %v474
      %v489 = vpack.c.b16 %v477, %v476
      %v490 = vpack.c.b16 %v479, %v478
      %v491 = vpack.c.b16 %v481, %v480
      %v492 = vpack.c.b16 %v483, %v482
      %v493 = vpack.c.b16 %v485, %v484
      %502 = vmatprep.subr.bf16.mxu0 0
      %503 = vmatpush1.bf16.msra.mxu0 %v486
      %504 = vmatprep.subr.bf16.mxu0 0
      %505 = vmatpush1.bf16.msra.mxu0 %v487
      %506 = vmatprep.subr.bf16.mxu0 0
      %507 = vmatpush1.bf16.msra.mxu0 %v488
      %508 = vmatprep.subr.bf16.mxu0 0
      %509 = vmatpush1.bf16.msra.mxu0 %v489
      %510 = vmatprep.subr.bf16.mxu0 0
      %511 = vmatpush1.bf16.msra.mxu0 %v490
      %512 = vmatprep.subr.bf16.mxu0 0
      %513 = vmatpush1.bf16.msra.mxu0 %v491
      %514 = vmatprep.subr.bf16.mxu0 0
      %515 = vmatpush1.bf16.msra.mxu0 %v492
      %516 = vmatprep.subr.bf16.mxu0 0
      %517 = vmatpush1.bf16.msra.mxu0 %v493
      %518 = vmatprep.subr.bf16.mxu0 0
      %519 = vmatpush1.bf16.msra.mxu0 0
      %520 = vmatprep.subr.bf16.mxu0 0
      %521 = vmatpush1.bf16.msra.mxu0 0
      %522 = vmatprep.subr.bf16.mxu0 0
      %523 = vmatpush1.bf16.msra.mxu0 0
      %524 = vmatprep.subr.bf16.mxu0 0
      %525 = vmatpush1.bf16.msra.mxu0 0
      %526 = vmatprep.subr.bf16.mxu0 0
      %527 = vmatpush1.bf16.msra.mxu0 0
      %528 = vmatprep.subr.bf16.mxu0 0
      %529 = vmatpush1.bf16.msra.mxu0 0
      %530 = vmatprep.subr.bf16.mxu0 0
      %531 = vmatpush1.bf16.msra.mxu0 0
      %532 = vmatprep.subr.bf16.mxu0 0
      %533 = vmatpush1.bf16.msra.mxu0 0
      %534 = vmatprep.mubr.bf16.mxu0 0
      %535 = vmatmul.mubr.bf16.gmra.mrb[0].mxu0 %v390
      %v536 = vpop.f32.mrb[0].mxu0
      %v537 = vadd.f32 %v260, %v536
      %v538 = vpop.f32.mrb[0].mxu0
      %v539 = vpop.f32.mrb[0].mxu0
      %v540 = vadd.f32 %v260, %v539
      %v541 = vpop.f32.mrb[0].mxu0
      %542 = vmatprep.mubr.bf16.mxu0 0
      %543 = vmatmul.mubr.bf16.gmra.mrb[0].mxu0 %v391
      %v544 = vpop.f32.mrb[0].mxu0
      %v545 = vadd.f32 %v260, %v544
      %v546 = vpop.f32.mrb[0].mxu0
      %v547 = vpop.f32.mrb[0].mxu0
      %v548 = vadd.f32 %v260, %v547
      %v549 = vpop.f32.mrb[0].mxu0
      %550 = vmatprep.mubr.bf16.mxu0 0
      %551 = vmatmul.mubr.bf16.gmra.mrb[0].mxu0 %v392
      %v552 = vpop.f32.mrb[0].mxu0
      %v553 = vadd.f32 %v260, %v552
      %v554 = vpop.f32.mrb[0].mxu0
      %v555 = vpop.f32.mrb[0].mxu0
      %v556 = vadd.f32 %v260, %v555
      %v557 = vpop.f32.mrb[0].mxu0
      %558 = vmatprep.mubr.bf16.mxu0 0
      %559 = vmatmul.mubr.bf16.gmra.mrb[0].mxu0 %v393
      %v560 = vpop.f32.mrb[0].mxu0
      %v561 = vadd.f32 %v260, %v560
      %v562 = vpop.f32.mrb[0].mxu0
      %v563 = vpop.f32.mrb[0].mxu0
      %v564 = vadd.f32 %v260, %v563
      %v565 = vpop.f32.mrb[0].mxu0
      %566 = vmatprep.mubr.bf16.mxu0 0
      %567 = vmatmul.mubr.bf16.gmra.mrb[0].mxu0 %v394
      %v568 = vpop.f32.mrb[0].mxu0
      %v569 = vadd.f32 %v260, %v568
      %v570 = vpop.f32.mrb[0].mxu0
      %v571 = vpop.f32.mrb[0].mxu0
      %v572 = vadd.f32 %v260, %v571
      %v573 = vpop.f32.mrb[0].mxu0
      %574 = vmatprep.mubr.bf16.mxu0 0
      %575 = vmatmul.mubr.bf16.gmra.mrb[0].mxu0 %v395
      %v576 = vpop.f32.mrb[0].mxu0
      %v577 = vadd.f32 %v260, %v576
      %v578 = vpop.f32.mrb[0].mxu0
      %v579 = vpop.f32.mrb[0].mxu0
      %v580 = vadd.f32 %v260, %v579
      %v581 = vpop.f32.mrb[0].mxu0
      %582 = vmatprep.mubr.bf16.mxu0 0
      %583 = vmatmul.mubr.bf16.gmra.mrb[0].mxu0 %v396
      %v584 = vpop.f32.mrb[0].mxu0
      %v585 = vadd.f32 %v260, %v584
      %v586 = vpop.f32.mrb[0].mxu0
      %v587 = vpop.f32.mrb[0].mxu0
      %v588 = vadd.f32 %v260, %v587
      %v589 = vpop.f32.mrb[0].mxu0
      %590 = vmatprep.mubr.bf16.mxu0 0
      %591 = vmatmul.mubr.bf16.gmra.mrb[0].mxu0 %v397
      %v592 = vpop.f32.mrb[0].mxu0
      %v593 = vadd.f32 %v260, %v592
      %v594 = vpop.f32.mrb[0].mxu0
      %v595 = vpop.f32.mrb[0].mxu0
      %v596 = vadd.f32 %v260, %v595
      %v597 = vpop.f32.mrb[0].mxu0
      %598 = vmatprep.mubr.bf16.mxu0 0
      %599 = vmatmul.mubr.bf16.gmra.mrb[0].mxu0 %v398
      %v600 = vpop.f32.mrb[0].mxu0
      %v601 = vadd.f32 %v260, %v600
      %v602 = vpop.f32.mrb[0].mxu0
      %v603 = vpop.f32.mrb[0].mxu0
      %v604 = vadd.f32 %v260, %v603
      %v605 = vpop.f32.mrb[0].mxu0
      %606 = vmatprep.mubr.bf16.mxu0 0
      %607 = vmatmul.mubr.bf16.gmra.mrb[0].mxu0 %v399
      %v608 = vpop.f32.mrb[0].mxu0
      %v609 = vadd.f32 %v260, %v608
      %v610 = vpop.f32.mrb[0].mxu0
      %v611 = vpop.f32.mrb[0].mxu0
      %v612 = vadd.f32 %v260, %v611
      %v613 = vpop.f32.mrb[0].mxu0
      %614 = vmatprep.mubr.bf16.mxu0 0
      %615 = vmatmul.mubr.bf16.gmra.mrb[0].mxu0 %v400
      %v616 = vpop.f32.mrb[0].mxu0
      %v617 = vadd.f32 %v260, %v616
      %v618 = vpop.f32.mrb[0].mxu0
      %v619 = vpop.f32.mrb[0].mxu0
      %v620 = vadd.f32 %v260, %v619
      %v621 = vpop.f32.mrb[0].mxu0
      %622 = vmatprep.mubr.bf16.mxu0 0
      %623 = vmatmul.mubr.bf16.gmra.mrb[0].mxu0 %v401
      %v624 = vpop.f32.mrb[0].mxu0
      %v625 = vadd.f32 %v260, %v624
      %v626 = vpop.f32.mrb[0].mxu0
      %v627 = vpop.f32.mrb[0].mxu0
      %v628 = vadd.f32 %v260, %v627
      %v629 = vpop.f32.mrb[0].mxu0
      %630 = vmatprep.mubr.bf16.mxu0 0
      %631 = vmatmul.mubr.bf16.gmra.mrb[0].mxu0 %v402
      %v632 = vpop.f32.mrb[0].mxu0
      %v633 = vadd.f32 %v260, %v632
      %v634 = vpop.f32.mrb[0].mxu0
      %v635 = vpop.f32.mrb[0].mxu0
      %v636 = vadd.f32 %v260, %v635
      %v637 = vpop.f32.mrb[0].mxu0
      %638 = vmatprep.mubr.bf16.mxu0 0
      %639 = vmatmul.mubr.bf16.gmra.mrb[0].mxu0 %v403
      %v640 = vpop.f32.mrb[0].mxu0
      %v641 = vadd.f32 %v260, %v640
      %v642 = vpop.f32.mrb[0].mxu0
      %v643 = vpop.f32.mrb[0].mxu0
      %v644 = vadd.f32 %v260, %v643
      %v645 = vpop.f32.mrb[0].mxu0
      %646 = vmatprep.mubr.bf16.mxu0 0
      %647 = vmatmul.mubr.bf16.gmra.mrb[0].mxu0 %v404
      %v648 = vpop.f32.mrb[0].mxu0
      %v649 = vadd.f32 %v260, %v648
      %v650 = vpop.f32.mrb[0].mxu0
      %v651 = vpop.f32.mrb[0].mxu0
      %v652 = vadd.f32 %v260, %v651
      %v653 = vpop.f32.mrb[0].mxu0
      %654 = vmatprep.mubr.bf16.mxu0 0
      %655 = vmatmul.mubr.bf16.gmra.mrb[0].mxu0 %v405
      %v656 = vpop.f32.mrb[0].mxu0
      %v657 = vadd.f32 %v260, %v656
      %v658 = vpop.f32.mrb[0].mxu0
      %v659 = vpop.f32.mrb[0].mxu0
      %v660 = vadd.f32 %v260, %v659
      %v661 = vpop.f32.mrb[0].mxu0
      %662 = vmatprep.mubr.bf16.mxu0 0
      %663 = vmatmul.mubr.bf16.gmra.mrb[0].mxu0 %v406
      %v664 = vpop.f32.mrb[0].mxu0
      %v665 = vadd.f32 %v260, %v664
      %v666 = vpop.f32.mrb[0].mxu0
      %v667 = vpop.f32.mrb[0].mxu0
      %v668 = vadd.f32 %v260, %v667
      %v669 = vpop.f32.mrb[0].mxu0
      %670 = vmatprep.mubr.bf16.mxu0 0
      %671 = vmatmul.mubr.bf16.gmra.mrb[0].mxu0 %v407
      %v672 = vpop.f32.mrb[0].mxu0
      %v673 = vadd.f32 %v260, %v672
      %v674 = vpop.f32.mrb[0].mxu0
      %v675 = vpop.f32.mrb[0].mxu0
      %v676 = vadd.f32 %v260, %v675
      %v677 = vpop.f32.mrb[0].mxu0
      %678 = vmatprep.mubr.bf16.mxu0 0
      %679 = vmatmul.mubr.bf16.gmra.mrb[0].mxu0 %v408
      %v680 = vpop.f32.mrb[0].mxu0
      %v681 = vadd.f32 %v260, %v680
      %v682 = vpop.f32.mrb[0].mxu0
      %v683 = vpop.f32.mrb[0].mxu0
      %v684 = vadd.f32 %v260, %v683
      %v685 = vpop.f32.mrb[0].mxu0
      %686 = vmatprep.mubr.bf16.mxu0 0
      %687 = vmatmul.mubr.bf16.gmra.mrb[0].mxu0 %v409
      %v688 = vpop.f32.mrb[0].mxu0
      %v689 = vadd.f32 %v260, %v688
      %v690 = vpop.f32.mrb[0].mxu0
      %v691 = vpop.f32.mrb[0].mxu0
      %v692 = vadd.f32 %v260, %v691
      %v693 = vpop.f32.mrb[0].mxu0
      %694 = vmatprep.mubr.bf16.mxu0 0
      %695 = vmatmul.mubr.bf16.gmra.mrb[0].mxu0 %v410
      %v696 = vpop.f32.mrb[0].mxu0
      %v697 = vadd.f32 %v260, %v696
      %v698 = vpop.f32.mrb[0].mxu0
      %v699 = vpop.f32.mrb[0].mxu0
      %v700 = vadd.f32 %v260, %v699
      %v701 = vpop.f32.mrb[0].mxu0
      %702 = vmatprep.mubr.bf16.mxu0 0
      %703 = vmatmul.mubr.bf16.gmra.mrb[0].mxu0 %v411
      %v704 = vpop.f32.mrb[0].mxu0
      %v705 = vadd.f32 %v260, %v704
      %v706 = vpop.f32.mrb[0].mxu0
      %v707 = vpop.f32.mrb[0].mxu0
      %v708 = vadd.f32 %v260, %v707
      %v709 = vpop.f32.mrb[0].mxu0
      %710 = vmatprep.mubr.bf16.mxu0 0
      %711 = vmatmul.mubr.bf16.gmra.mrb[0].mxu0 %v412
      %v712 = vpop.f32.mrb[0].mxu0
      %v713 = vadd.f32 %v260, %v712
      %v714 = vpop.f32.mrb[0].mxu0
      %v715 = vpop.f32.mrb[0].mxu0
      %v716 = vadd.f32 %v260, %v715
      %v717 = vpop.f32.mrb[0].mxu0
      %718 = vmatprep.mubr.bf16.mxu0 0
      %719 = vmatmul.mubr.bf16.gmra.mrb[0].mxu0 %v413
      %v720 = vpop.f32.mrb[0].mxu0
      %v721 = vadd.f32 %v260, %v720
      %v722 = vpop.f32.mrb[0].mxu0
      %v723 = vpop.f32.mrb[0].mxu0
      %v724 = vadd.f32 %v260, %v723
      %v725 = vpop.f32.mrb[0].mxu0
      %726 = vmatprep.mubr.bf16.mxu0 0
      %727 = vmatmul.mubr.bf16.gmra.mrb[0].mxu0 %v414
      %v728 = vpop.f32.mrb[0].mxu0
      %v729 = vadd.f32 %v260, %v728
      %v730 = vpop.f32.mrb[0].mxu0
      %v731 = vpop.f32.mrb[0].mxu0
      %v732 = vadd.f32 %v260, %v731
      %v733 = vpop.f32.mrb[0].mxu0
      %734 = vmatprep.mubr.bf16.mxu0 0
      %735 = vmatmul.mubr.bf16.gmra.mrb[0].mxu0 %v415
      %v736 = vpop.f32.mrb[0].mxu0
      %v737 = vadd.f32 %v260, %v736
      %v738 = vpop.f32.mrb[0].mxu0
      %v739 = vpop.f32.mrb[0].mxu0
      %v740 = vadd.f32 %v260, %v739
      %v741 = vpop.f32.mrb[0].mxu0
      %742 = vmatprep.mubr.bf16.mxu0 0
      %743 = vmatmul.mubr.bf16.gmra.mrb[0].mxu0 %v416
      %v744 = vpop.f32.mrb[0].mxu0
      %v745 = vadd.f32 %v260, %v744
      %v746 = vpop.f32.mrb[0].mxu0
      %v747 = vpop.f32.mrb[0].mxu0
      %v748 = vadd.f32 %v260, %v747
      %v749 = vpop.f32.mrb[0].mxu0
      %750 = vmatprep.mubr.bf16.mxu0 0
      %751 = vmatmul.mubr.bf16.gmra.mrb[0].mxu0 %v417
      %v752 = vpop.f32.mrb[0].mxu0
      %v753 = vadd.f32 %v260, %v752
      %v754 = vpop.f32.mrb[0].mxu0
      %v755 = vpop.f32.mrb[0].mxu0
      %v756 = vadd.f32 %v260, %v755
      %v757 = vpop.f32.mrb[0].mxu0
      %758 = vmatprep.mubr.bf16.mxu0 0
      %759 = vmatmul.mubr.bf16.gmra.mrb[0].mxu0 %v418
      %v760 = vpop.f32.mrb[0].mxu0
      %v761 = vadd.f32 %v260, %v760
      %v762 = vpop.f32.mrb[0].mxu0
      %v763 = vpop.f32.mrb[0].mxu0
      %v764 = vadd.f32 %v260, %v763
      %v765 = vpop.f32.mrb[0].mxu0
      %766 = vmatprep.mubr.bf16.mxu0 0
      %767 = vmatmul.mubr.bf16.gmra.mrb[0].mxu0 %v419
      %v768 = vpop.f32.mrb[0].mxu0
      %v769 = vadd.f32 %v260, %v768
      %v770 = vpop.f32.mrb[0].mxu0
      %v771 = vpop.f32.mrb[0].mxu0
      %v772 = vadd.f32 %v260, %v771
      %v773 = vpop.f32.mrb[0].mxu0
      %774 = vmatprep.mubr.bf16.mxu0 0
      %775 = vmatmul.mubr.bf16.gmra.mrb[0].mxu0 %v420
      %v776 = vpop.f32.mrb[0].mxu0
      %v777 = vadd.f32 %v260, %v776
      %v778 = vpop.f32.mrb[0].mxu0
      %v779 = vpop.f32.mrb[0].mxu0
      %v780 = vadd.f32 %v260, %v779
      %v781 = vpop.f32.mrb[0].mxu0
      %782 = vmatprep.mubr.bf16.mxu0 0
      %783 = vmatmul.mubr.bf16.gmra.mrb[0].mxu0 %v421
      %v784 = vpop.f32.mrb[0].mxu0
      %v785 = vadd.f32 %v260, %v784
      %v786 = vpop.f32.mrb[0].mxu0
      %v787 = vpop.f32.mrb[0].mxu0
      %v788 = vadd.f32 %v260, %v787
      %v789 = vpop.f32.mrb[0].mxu0
      %790 = vdwg.mxu0
      %791 = vst [vmem:[%s172] sm:$0xff] %v537
      %792 = vst [vmem:[%s172 + $0x8] sm:$0xff] %v540
      %793 = vst [vmem:[%s172 + $0x10] sm:$0xff] %v545
      %794 = vst [vmem:[%s172 + $0x18] sm:$0xff] %v548
      %795 = vst [vmem:[%s172 + $0x20] sm:$0xff] %v553
      %796 = vst [vmem:[%s172 + $0x28] sm:$0xff] %v556
      %797 = vst [vmem:[%s172 + $0x30] sm:$0xff] %v561
      %798 = vst [vmem:[%s172 + $0x38] sm:$0xff] %v564
      %799 = vst [vmem:[%s172 + $0x40] sm:$0xff] %v569
      %800 = vst [vmem:[%s172 + $0x48] sm:$0xff] %v572
      %801 = vst [vmem:[%s172 + $0x50] sm:$0xff] %v577
      %802 = vst [vmem:[%s172 + $0x58] sm:$0xff] %v580
      %803 = vst [vmem:[%s172 + $0x60] sm:$0xff] %v585
      %804 = vst [vmem:[%s172 + $0x68] sm:$0xff] %v588
      %805 = vst [vmem:[%s172 + $0x70] sm:$0xff] %v593
      %806 = vst [vmem:[%s172 + $0x78] sm:$0xff] %v596
      %807 = vst [vmem:[%s172 + $0x80] sm:$0xff] %v601
      %808 = vst [vmem:[%s172 + $0x88] sm:$0xff] %v604
      %809 = vst [vmem:[%s172 + $0x90] sm:$0xff] %v609
      %810 = vst [vmem:[%s172 + $0x98] sm:$0xff] %v612
      %811 = vst [vmem:[%s172 + $0xa0] sm:$0xff] %v617
      %812 = vst [vmem:[%s172 + $0xa8] sm:$0xff] %v620
      %813 = vst [vmem:[%s172 + $0xb0] sm:$0xff] %v625
      %814 = vst [vmem:[%s172 + $0xb8] sm:$0xff] %v628
      %815 = vst [vmem:[%s172 + $0xc0] sm:$0xff] %v633
      %816 = vst [vmem:[%s172 + $0xc8] sm:$0xff] %v636
      %817 = vst [vmem:[%s172 + $0xd0] sm:$0xff] %v641
      %818 = vst [vmem:[%s172 + $0xd8] sm:$0xff] %v644
      %819 = vst [vmem:[%s172 + $0xe0] sm:$0xff] %v649
      %820 = vst [vmem:[%s172 + $0xe8] sm:$0xff] %v652
      %821 = vst [vmem:[%s172 + $0xf0] sm:$0xff] %v657
      %822 = vst [vmem:[%s172 + $0xf8] sm:$0xff] %v660
      %823 = vst [vmem:[%s172 + $0x100] sm:$0xff] %v665
      %824 = vst [vmem:[%s172 + $0x108] sm:$0xff] %v668
      %825 = vst [vmem:[%s172 + $0x110] sm:$0xff] %v673
      %826 = vst [vmem:[%s172 + $0x118] sm:$0xff] %v676
      %827 = vst [vmem:[%s172 + $0x120] sm:$0xff] %v681
      %828 = vst [vmem:[%s172 + $0x128] sm:$0xff] %v684
      %829 = vst [vmem:[%s172 + $0x130] sm:$0xff] %v689
      %830 = vst [vmem:[%s172 + $0x138] sm:$0xff] %v692
      %831 = vst [vmem:[%s172 + $0x140] sm:$0xff] %v697
      %832 = vst [vmem:[%s172 + $0x148] sm:$0xff] %v700
      %833 = vst [vmem:[%s172 + $0x150] sm:$0xff] %v705
      %834 = vst [vmem:[%s172 + $0x158] sm:$0xff] %v708
      %835 = vst [vmem:[%s172 + $0x160] sm:$0xff] %v713
      %836 = vst [vmem:[%s172 + $0x168] sm:$0xff] %v716
      %837 = vst [vmem:[%s172 + $0x170] sm:$0xff] %v721
      %838 = vst [vmem:[%s172 + $0x178] sm:$0xff] %v724
      %839 = vst [vmem:[%s172 + $0x180] sm:$0xff] %v729
      %840 = vst [vmem:[%s172 + $0x188] sm:$0xff] %v732
      %841 = vst [vmem:[%s172 + $0x190] sm:$0xff] %v737
      %842 = vst [vmem:[%s172 + $0x198] sm:$0xff] %v740
      %843 = vst [vmem:[%s172 + $0x1a0] sm:$0xff] %v745
      %844 = vst [vmem:[%s172 + $0x1a8] sm:$0xff] %v748
      %845 = vst [vmem:[%s172 + $0x1b0] sm:$0xff] %v753
      %846 = vst [vmem:[%s172 + $0x1b8] sm:$0xff] %v756
      %847 = vst [vmem:[%s172 + $0x1c0] sm:$0xff] %v761
      %848 = vst [vmem:[%s172 + $0x1c8] sm:$0xff] %v764
      %849 = vst [vmem:[%s172 + $0x1d0] sm:$0xff] %v769
      %850 = vst [vmem:[%s172 + $0x1d8] sm:$0xff] %v772
      %851 = vst [vmem:[%s172 + $0x1e0] sm:$0xff] %v777
      %852 = vst [vmem:[%s172 + $0x1e8] sm:$0xff] %v780
      %853 = vst [vmem:[%s172 + $0x1f0] sm:$0xff] %v785
      %854 = vst [vmem:[%s172 + $0x1f8] sm:$0xff] %v788
      %s855 = smul.u32 64, %s14
      %p856 = scmp.lt.s32.totalorder %s855, 191
      %s857 = scalar_select %p856, %s855, 191
      %s858 = smul.addr %s857, 8
      %s859 = scalar_lea.vmem %s3, %s858
      // Predicated region
      $region33: #{_lambda_.3} parent=31 // pred_check
        %p860 = pneg %p100
      $region34: #{_lambda_.3} parent=31 // pred_check_branch
        %862 = sbr.rel (%p860) target = $region36
      $region35: #{_lambda_.3} parent=31 // pred_region
        %s863 = smul.u32 64, %s14
      $region36: #{_lambda_.3} parent=31 // pred_fallthru
        _
    $region32: #{_lambda_.3} parent=5 // pred_fallthru
      _
    %p864 = scmp.le.s32.totalorder 2, %s9
    // Predicated region
    $region37: #{_lambda_.3} parent=5 // pred_check
      %p865 = pneg %p864
    $region38: #{_lambda_.3} parent=5 // pred_check_branch
      %867 = sbr.rel (%p865) target = $region40
    $region39: #{_lambda_.3} parent=5 // pred_region
      %s868 = ssub.s32 %s9, 2
      // Predicated region
      $region41: #{_lambda_.3} parent=39 // pred_check
        %p869 = pneg %p106
      $region42: #{_lambda_.3} parent=39 // pred_check_branch
        %871 = sbr.rel (%p869) target = $region44
      $region43: #{_lambda_.3} parent=39 // pred_region
        %s872 = smul.u32 64, %s15
        %p873 = scmp.lt.s32.totalorder %s872, 191
        %s874 = scalar_select %p873, %s872, 191
        %s875 = smul.addr %s874, 8
        %s876 = scalar_lea.vmem %s3, %s875
      $region44: #{_lambda_.3} parent=39 // pred_fallthru
        _
    $region40: #{_lambda_.3} parent=5 // pred_fallthru
      _
  $region6: #{_lambda_.3} parent=0 // loop_footer
    %s13 = sadd.s32 1, %s9
  $region7: #{_lambda_.3} parent=0 // loop_footer_branch
    %8 = sbr.rel target = $region3
  $region8: #{_lambda_.3} parent=0 // loop_exit
    _

// kernel: _lambda_.4
$region0: #{_lambda_.4}
  #allocation0 [shape = 'u32[]', space=smem, size = 0x4, offset = 0x4, fixed_abs, tag = 'smem constant byte address 0x4 - core index']
  #allocation1 [shape = 'u32[144,128]{1,0:T(1,128)}', space=vmem, size = 0x12000, scoped, tag = 'internal scratch']
  %s0 = inlined_call_operand.vmem [shape: bf16[128,256], index: 0, kind: input, shape index: {}]
  %s1 = inlined_call_operand.vmem [shape: bf16[256,128], index: 1, kind: input, shape index: {}]
  %s2 = inlined_call_operand.vmem [shape: f32[1,128], index: 2, kind: input, shape index: {}]
  %s3 = inlined_call_operand.vmem [shape: f32[128,128], index: 3, kind: output, shape index: {}]
  %s4 = sld [smem:[#allocation0]]
  $region45: #{_lambda_.4} parent=0
    _
  %s6 = ssub.s32 1, %s4
  %s7 = scalar_select 0, %s6, %s4
  loop: start=0, step=1, limit=4
  $region2: #{_lambda_.4} parent=0 // loop_pre_header
    _
  $region3: #{_lambda_.4} parent=0 // loop_header
    %s9 = sphi 0, %s13
    %p10 = scmp.ge.s32.totalorder %s9, 4
    %s19 = sphi 0, %s21
    %s22 = sphi 0, %s19
    %s23 = sphi 0, %s22
    %s39 = sphi 0, %s23
    %s43 = sphi 0, %s43
    %s45 = sphi 0, %s43
    %s46 = sphi 0, %s45
    %s60 = sphi 0, %s46
    %s64 = sphi 0, %s64
    %s66 = sphi 0, %s64
    %s67 = sphi 0, %s66
    %s81 = sphi 0, %s67
    %s87 = sphi 0, %s89
    %s90 = sphi 0, %s87
    %s91 = sphi 0, %s90
    %s107 = sphi 0, %s91
  $region4: #{_lambda_.4} parent=0 // loop_header_branch
    %12 = sbr.rel (%p10) target = $region8
  $region5: #{_lambda_.4} parent=0 // loop_body
    %s14 = ssub.s32 %s9, 1
    %s15 = ssub.s32 %s9, 2
    %s16 = sadd.s32 %s9, 1
    %s17 = ssub.s32 %s9, %s16
    %p18 = scmp.eq.s32.totalorder %s17, 0
    %s20 = sadd.s32 %s19, 1
    %s21 = scalar_select %p18, %s19, %s20
    %p24 = pneg %p18
    %p25 = scmp.eq.s32.totalorder %s9, 1
    %p26 = por %p24, %p25
    %p27 = scmp.ne.s32.totalorder %s19, %s22
    %p28 = scmp.eq.s32.totalorder %s9, 0
    %p29 = por %p27, %p28
    %p30 = scmp.ne.s32.totalorder %s19, %s22
    %p31 = scmp.eq.s32.totalorder %s14, 1
    %p32 = por %p30, %p31
    %p33 = scmp.ne.s32.totalorder %s22, %s23
    %p34 = scmp.eq.s32.totalorder %s14, 0
    %p35 = por %p33, %p34
    %p36 = scmp.ne.s32.totalorder %s22, %s23
    %p37 = scmp.eq.s32.totalorder %s15, 1
    %p38 = por %p36, %p37
    %p40 = scmp.ne.s32.totalorder %s23, %s39
    %p41 = scmp.eq.s32.totalorder %s15, 0
    %p42 = por %p40, %p41
    %s44 = sadd.s32 %s43, 1
    %p47 = scmp.eq.s32.totalorder %s9, 1
    %p48 = scmp.ne.s32.totalorder %s43, %s45
    %p49 = scmp.eq.s32.totalorder %s9, 0
    %p50 = por %p48, %p49
    %p51 = scmp.ne.s32.totalorder %s43, %s45
    %p52 = scmp.eq.s32.totalorder %s14, 1
    %p53 = por %p51, %p52
    %p54 = scmp.ne.s32.totalorder %s45, %s46
    %p55 = scmp.eq.s32.totalorder %s14, 0
    %p56 = por %p54, %p55
    %p57 = scmp.ne.s32.totalorder %s45, %s46
    %p58 = scmp.eq.s32.totalorder %s15, 1
    %p59 = por %p57, %p58
    %p61 = scmp.ne.s32.totalorder %s46, %s60
    %p62 = scmp.eq.s32.totalorder %s15, 0
    %p63 = por %p61, %p62
    %s65 = sadd.s32 %s64, 1
    %p68 = scmp.eq.s32.totalorder %s9, 1
    %p69 = scmp.ne.s32.totalorder %s64, %s66
    %p70 = scmp.eq.s32.totalorder %s9, 0
    %p71 = por %p69, %p70
    %p72 = scmp.ne.s32.totalorder %s64, %s66
    %p73 = scmp.eq.s32.totalorder %s14, 1
    %p74 = por %p72, %p73
    %p75 = scmp.ne.s32.totalorder %s66, %s67
    %p76 = scmp.eq.s32.totalorder %s14, 0
    %p77 = por %p75, %p76
    %p78 = scmp.ne.s32.totalorder %s66, %s67
    %p79 = scmp.eq.s32.totalorder %s15, 1
    %p80 = por %p78, %p79
    %p82 = scmp.ne.s32.totalorder %s67, %s81
    %p83 = scmp.eq.s32.totalorder %s15, 0
    %p84 = por %p82, %p83
    %s85 = ssub.s32 %s9, %s16
    %p86 = scmp.eq.s32.totalorder %s85, 0
    %s88 = sadd.s32 %s87, 1
    %s89 = scalar_select %p86, %s87, %s88
    %p92 = pneg %p86
    %p93 = scmp.eq.s32.totalorder %s9, 1
    %p94 = por %p92, %p93
    %p95 = scmp.ne.s32.totalorder %s87, %s90
    %p96 = scmp.eq.s32.totalorder %s9, 0
    %p97 = por %p95, %p96
    %p98 = scmp.ne.s32.totalorder %s87, %s90
    %p99 = scmp.eq.s32.totalorder %s14, 1
    %p100 = por %p98, %p99
    %p101 = scmp.ne.s32.totalorder %s90, %s91
    %p102 = scmp.eq.s32.totalorder %s14, 0
    %p103 = por %p101, %p102
    %p104 = scmp.ne.s32.totalorder %s90, %s91
    %p105 = scmp.eq.s32.totalorder %s15, 1
    %p106 = por %p104, %p105
    %p108 = scmp.ne.s32.totalorder %s91, %s107
    %p109 = scmp.eq.s32.totalorder %s15, 0
    %p110 = por %p108, %p109
    %p111 = scmp.le.s32.totalorder 1, %s9
    %p112 = scmp.lt.s32.totalorder %s9, 3
    %p113 = pnand %p111, %p112
    %p114 = pneg %p113
    // Predicated region
    $region9: #{_lambda_.4} parent=5 // pred_check
      _
    $region10: #{_lambda_.4} parent=5 // pred_check_branch
      %116 = sbr.rel (%p113) target = $region12
    $region11: #{_lambda_.4} parent=5 // pred_region
      %s117 = ssub.s32 %s9, 1
      // Predicated region
      $region13: #{_lambda_.4} parent=11 // pred_check
        %p118 = pneg %p56
      $region14: #{_lambda_.4} parent=11 // pred_check_branch
        %120 = sbr.rel (%p118) target = $region16
      $region15: #{_lambda_.4} parent=11 // pred_region
        _
      $region16: #{_lambda_.4} parent=11 // pred_fallthru
        _
      // Predicated region
      $region17: #{_lambda_.4} parent=11 // pred_check
        %p121 = pneg %p77
      $region18: #{_lambda_.4} parent=11 // pred_check_branch
        %123 = sbr.rel (%p121) target = $region20
      $region19: #{_lambda_.4} parent=11 // pred_region
        _
      $region20: #{_lambda_.4} parent=11 // pred_fallthru
        _
    $region12: #{_lambda_.4} parent=5 // pred_fallthru
      _
    %p124 = scmp.lt.s32.totalorder %s9, 2
    // Predicated region
    $region21: #{_lambda_.4} parent=5 // pred_check
      %p125 = pneg %p124
    $region22: #{_lambda_.4} parent=5 // pred_check_branch
      %127 = sbr.rel (%p125) target = $region24
    $region23: #{_lambda_.4} parent=5 // pred_region
      // Predicated region
      $region25: #{_lambda_.4} parent=23 // pred_check
        %p128 = pneg %p29
      $region26: #{_lambda_.4} parent=23 // pred_check_branch
        %130 = sbr.rel (%p128) target = $region28
      $region27: #{_lambda_.4} parent=23 // pred_region
        %s131 = smul.u32 8, %s9
        %p132 = scmp.lt.s32.totalorder %s131, 15
        %s133 = scalar_select %p132, %s131, 15
        %s134 = smul.addr %s133, 2
        %s135 = smul.addr %s134, 4
        %s136 = scalar_lea.vmem %s0, %s135
        %s137 = smul.u32 8, %s9
      $region28: #{_lambda_.4} parent=23 // pred_fallthru
        _
    $region24: #{_lambda_.4} parent=5 // pred_fallthru
      _
    %p138 = scmp.le.s32.totalorder 1, %s9
    %p139 = scmp.lt.s32.totalorder %s9, 3
    %p140 = pnand %p138, %p139
    %p141 = pneg %p140
    // Predicated region
    $region29: #{_lambda_.4} parent=5 // pred_check
      _
    $region30: #{_lambda_.4} parent=5 // pred_check_branch
      %143 = sbr.rel (%p140) target = $region32
    $region31: #{_lambda_.4} parent=5 // pred_region
      %s144 = ssub.s32 %s9, 1
      %s145 = smul.u32 8, %s14
      %p146 = scmp.lt.s32.totalorder %s145, 15
      %s147 = scalar_select %p146, %s145, 15
      %s148 = smul.addr %s147, 2
      %s149 = smul.addr %s148, 4
      %s150 = scalar_lea.vmem %s0, %s149
      %p151 = pneg %p35
      %p152 = pneg %p32
      %p153 = pneg %p56
      %p154 = pneg %p53
      %p155 = pneg %p77
      %p156 = pneg %p74
      %p157 = pneg %p103
      %p158 = pneg %p100
      %s159 = smul.u32 8, %s14
      %p160 = scmp.lt.s32.totalorder %s159, 15
      %s161 = scalar_select %p160, %s159, 15
      %s162 = smul.addr %s161, 8
      %s163 = scalar_lea.vmem %s3, %s162
      %s164 = smul.u32 8, %s14
      %p165 = scmp.lt.s32.totalorder %s164, 15
      %s166 = scalar_select %p165, %s164, 15
      %s167 = smul.addr %s166, 2
      %s168 = smul.addr %s167, 4
      %s169 = scalar_lea.vmem %s0, %s168
      %s170 = smul.u32 8, %s14
      %s171 = smul.u32 8, %s14
      %p172 = scmp.lt.s32.totalorder %s171, 15
      %s173 = scalar_select %p172, %s171, 15
      %s174 = smul.addr %s173, 8
      %s175 = scalar_lea.vmem %s3, %s174
      %s176 = smul.u32 8, %s14
      %v178 = vld [vmem:[%s169] sm:$0xff]
      %v179 = vld [vmem:[%s169 + $0x8] sm:$0xff]
      %v180 = vld [vmem:[%s169 + $0x10] sm:$0xff]
      %v181 = vld [vmem:[%s169 + $0x18] sm:$0xff]
      %v182 = vld [vmem:[%s169 + $0x20] sm:$0xff]
      %v183 = vld [vmem:[%s169 + $0x28] sm:$0xff]
      %v184 = vld [vmem:[%s169 + $0x30] sm:$0xff]
      %v185 = vld [vmem:[%s169 + $0x38] sm:$0xff]
      %v186 = vld [vmem:[%s1] sm:$0xf]
      %v187 = vld [vmem:[%s1 + $0x4] sm:$0xf]
      %v188 = vld [vmem:[%s1 + $0x8] sm:$0xf]
      %v189 = vld [vmem:[%s1 + $0xc] sm:$0xf]
      %v190 = vld [vmem:[%s1 + $0x10] sm:$0xf]
      %v191 = vld [vmem:[%s1 + $0x14] sm:$0xf]
      %v192 = vld [vmem:[%s1 + $0x18] sm:$0xf]
      %v193 = vld [vmem:[%s1 + $0x1c] sm:$0xf]
      %v194 = vld [vmem:[%s1 + $0x20] sm:$0xf]
      %v195 = vld [vmem:[%s1 + $0x24] sm:$0xf]
      %v196 = vld [vmem:[%s1 + $0x28] sm:$0xf]
      %v197 = vld [vmem:[%s1 + $0x2c] sm:$0xf]
      %v198 = vld [vmem:[%s1 + $0x30] sm:$0xf]
      %v199 = vld [vmem:[%s1 + $0x34] sm:$0xf]
      %v200 = vld [vmem:[%s1 + $0x38] sm:$0xf]
      %v201 = vld [vmem:[%s1 + $0x3c] sm:$0xf]
      %v202 = vld [vmem:[%s1 + $0x40] sm:$0xf]
      %v203 = vld [vmem:[%s1 + $0x44] sm:$0xf]
      %v204 = vld [vmem:[%s1 + $0x48] sm:$0xf]
      %v205 = vld [vmem:[%s1 + $0x4c] sm:$0xf]
      %v206 = vld [vmem:[%s1 + $0x50] sm:$0xf]
      %v207 = vld [vmem:[%s1 + $0x54] sm:$0xf]
      %v208 = vld [vmem:[%s1 + $0x58] sm:$0xf]
      %v209 = vld [vmem:[%s1 + $0x5c] sm:$0xf]
      %v210 = vld [vmem:[%s1 + $0x60] sm:$0xf]
      %v211 = vld [vmem:[%s1 + $0x64] sm:$0xf]
      %v212 = vld [vmem:[%s1 + $0x68] sm:$0xf]
      %v213 = vld [vmem:[%s1 + $0x6c] sm:$0xf]
      %v214 = vld [vmem:[%s1 + $0x70] sm:$0xf]
      %v215 = vld [vmem:[%s1 + $0x74] sm:$0xf]
      %v216 = vld [vmem:[%s1 + $0x78] sm:$0xf]
      %v217 = vld [vmem:[%s1 + $0x7c] sm:$0xf]
      %v218 = vld [vmem:[%s2] sm:$0x1]
      %v220 = vlaneseq
      %v221 = vshrl.u32 %v220, 7
      %v222 = vsub.s32 0, %v221
      %v223 = vrot.slane %v218, %v222
      %v233 = vunpack.c.l.b16 %v178
      %v234 = vunpack.c.h.b16 %v178
      %v235 = vunpack.c.l.b16 %v179
      %v236 = vunpack.c.h.b16 %v179
      %v237 = vunpack.c.l.b16 %v180
      %v238 = vunpack.c.h.b16 %v180
      %v239 = vunpack.c.l.b16 %v181
      %v240 = vunpack.c.h.b16 %v181
      %v241 = vunpack.c.l.b16 %v182
      %v242 = vunpack.c.h.b16 %v182
      %v243 = vunpack.c.l.b16 %v183
      %v244 = vunpack.c.h.b16 %v183
      %v245 = vunpack.c.l.b16 %v184
      %v246 = vunpack.c.h.b16 %v184
      %v247 = vunpack.c.l.b16 %v185
      %v248 = vunpack.c.h.b16 %v185
      %v249 = vpack.c.b16 %v235, %v233
      %v250 = vpack.c.b16 %v236, %v234
      %v251 = vpack.c.b16 %v239, %v237
      %v252 = vpack.c.b16 %v240, %v238
      %v253 = vpack.c.b16 %v243, %v241
      %v254 = vpack.c.b16 %v244, %v242
      %v255 = vpack.c.b16 %v247, %v245
      %v256 = vpack.c.b16 %v248, %v246
      %v297 = vunpack.c.l.b16 %v186
      %v298 = vunpack.c.l.b16 %v187
      %v299 = vunpack.c.l.b16 %v188
      %v300 = vunpack.c.l.b16 %v189
      %v301 = vunpack.c.l.b16 %v190
      %v302 = vunpack.c.l.b16 %v191
      %v303 = vunpack.c.l.b16 %v192
      %v304 = vunpack.c.l.b16 %v193
      %v305 = vunpack.c.l.b16 %v194
      %v306 = vunpack.c.l.b16 %v195
      %v307 = vunpack.c.l.b16 %v196
      %v308 = vunpack.c.l.b16 %v197
      %v309 = vunpack.c.l.b16 %v198
      %v310 = vunpack.c.l.b16 %v199
      %v311 = vunpack.c.l.b16 %v200
      %v312 = vunpack.c.l.b16 %v201
      %v313 = vunpack.c.l.b16 %v202
      %v314 = vunpack.c.l.b16 %v203
      %v315 = vunpack.c.l.b16 %v204
      %v316 = vunpack.c.l.b16 %v205
      %v317 = vunpack.c.l.b16 %v206
      %v318 = vunpack.c.l.b16 %v207
      %v319 = vunpack.c.l.b16 %v208
      %v320 = vunpack.c.l.b16 %v209
      %v321 = vunpack.c.l.b16 %v210
      %v322 = vunpack.c.l.b16 %v211
      %v323 = vunpack.c.l.b16 %v212
      %v324 = vunpack.c.l.b16 %v213
      %v325 = vunpack.c.l.b16 %v214
      %v326 = vunpack.c.l.b16 %v215
      %v327 = vunpack.c.l.b16 %v216
      %v328 = vunpack.c.l.b16 %v217
      %v329 = vpack.c.b16 %v298, %v297
      %v330 = vpack.c.b16 %v300, %v299
      %v331 = vpack.c.b16 %v302, %v301
      %v332 = vpack.c.b16 %v304, %v303
      %v333 = vpack.c.b16 %v306, %v305
      %v334 = vpack.c.b16 %v308, %v307
      %v335 = vpack.c.b16 %v310, %v309
      %v336 = vpack.c.b16 %v312, %v311
      %v337 = vpack.c.b16 %v314, %v313
      %v338 = vpack.c.b16 %v316, %v315
      %v339 = vpack.c.b16 %v318, %v317
      %v340 = vpack.c.b16 %v320, %v319
      %v341 = vpack.c.b16 %v322, %v321
      %v342 = vpack.c.b16 %v324, %v323
      %v343 = vpack.c.b16 %v326, %v325
      %v344 = vpack.c.b16 %v328, %v327
      %361 = vmatprep.subr.bf16.mxu0 0
      %362 = vmatpush1.bf16.msra.mxu0 %v329
      %363 = vmatprep.subr.bf16.mxu0 0
      %364 = vmatpush1.bf16.msra.mxu0 %v330
      %365 = vmatprep.subr.bf16.mxu0 0
      %366 = vmatpush1.bf16.msra.mxu0 %v331
      %367 = vmatprep.subr.bf16.mxu0 0
      %368 = vmatpush1.bf16.msra.mxu0 %v332
      %369 = vmatprep.subr.bf16.mxu0 0
      %370 = vmatpush1.bf16.msra.mxu0 %v333
      %371 = vmatprep.subr.bf16.mxu0 0
      %372 = vmatpush1.bf16.msra.mxu0 %v334
      %373 = vmatprep.subr.bf16.mxu0 0
      %374 = vmatpush1.bf16.msra.mxu0 %v335
      %375 = vmatprep.subr.bf16.mxu0 0
      %376 = vmatpush1.bf16.msra.mxu0 %v336
      %377 = vmatprep.subr.bf16.mxu0 0
      %378 = vmatpush1.bf16.msra.mxu0 %v337
      %379 = vmatprep.subr.bf16.mxu0 0
      %380 = vmatpush1.bf16.msra.mxu0 %v338
      %381 = vmatprep.subr.bf16.mxu0 0
      %382 = vmatpush1.bf16.msra.mxu0 %v339
      %383 = vmatprep.subr.bf16.mxu0 0
      %384 = vmatpush1.bf16.msra.mxu0 %v340
      %385 = vmatprep.subr.bf16.mxu0 0
      %386 = vmatpush1.bf16.msra.mxu0 %v341
      %387 = vmatprep.subr.bf16.mxu0 0
      %388 = vmatpush1.bf16.msra.mxu0 %v342
      %389 = vmatprep.subr.bf16.mxu0 0
      %390 = vmatpush1.bf16.msra.mxu0 %v343
      %391 = vmatprep.subr.bf16.mxu0 0
      %392 = vmatpush1.bf16.msra.mxu0 %v344
      %393 = vmatprep.mubr.bf16.mxu0 %v250
      %394 = vmatmul.mubr.bf16.gmra.mrb[0].mxu0 %v249
      %v395 = vpop.f32.mrb[0].mxu0
      %v396 = vadd.f32 %v223, %v395
      %v397 = vpop.f32.mrb[0].mxu0
      %v398 = vpop.f32.mrb[0].mxu0
      %v399 = vadd.f32 %v223, %v398
      %v400 = vpop.f32.mrb[0].mxu0
      %401 = vmatprep.mubr.bf16.mxu0 %v252
      %402 = vmatmul.mubr.bf16.gmra.mrb[0].mxu0 %v251
      %v403 = vpop.f32.mrb[0].mxu0
      %v404 = vadd.f32 %v223, %v403
      %v405 = vpop.f32.mrb[0].mxu0
      %v406 = vpop.f32.mrb[0].mxu0
      %v407 = vadd.f32 %v223, %v406
      %v408 = vpop.f32.mrb[0].mxu0
      %409 = vmatprep.mubr.bf16.mxu0 %v254
      %410 = vmatmul.mubr.bf16.gmra.mrb[0].mxu0 %v253
      %v411 = vpop.f32.mrb[0].mxu0
      %v412 = vadd.f32 %v223, %v411
      %v413 = vpop.f32.mrb[0].mxu0
      %v414 = vpop.f32.mrb[0].mxu0
      %v415 = vadd.f32 %v223, %v414
      %v416 = vpop.f32.mrb[0].mxu0
      %417 = vmatprep.mubr.bf16.mxu0 %v256
      %418 = vmatmul.mubr.bf16.gmra.mrb[0].mxu0 %v255
      %v419 = vpop.f32.mrb[0].mxu0
      %v420 = vadd.f32 %v223, %v419
      %v421 = vpop.f32.mrb[0].mxu0
      %v422 = vpop.f32.mrb[0].mxu0
      %v423 = vadd.f32 %v223, %v422
      %v424 = vpop.f32.mrb[0].mxu0
      %425 = vdwg.mxu0
      %426 = vst [vmem:[%s175] sm:$0xff] %v396
      %427 = vst [vmem:[%s175 + $0x8] sm:$0xff] %v399
      %428 = vst [vmem:[%s175 + $0x10] sm:$0xff] %v404
      %429 = vst [vmem:[%s175 + $0x18] sm:$0xff] %v407
      %430 = vst [vmem:[%s175 + $0x20] sm:$0xff] %v412
      %431 = vst [vmem:[%s175 + $0x28] sm:$0xff] %v415
      %432 = vst [vmem:[%s175 + $0x30] sm:$0xff] %v420
      %433 = vst [vmem:[%s175 + $0x38] sm:$0xff] %v423
      %s434 = smul.u32 8, %s14
      %p435 = scmp.lt.s32.totalorder %s434, 15
      %s436 = scalar_select %p435, %s434, 15
      %s437 = smul.addr %s436, 8
      %s438 = scalar_lea.vmem %s3, %s437
      // Predicated region
      $region33: #{_lambda_.4} parent=31 // pred_check
        %p439 = pneg %p100
      $region34: #{_lambda_.4} parent=31 // pred_check_branch
        %441 = sbr.rel (%p439) target = $region36
      $region35: #{_lambda_.4} parent=31 // pred_region
        %s442 = smul.u32 8, %s14
      $region36: #{_lambda_.4} parent=31 // pred_fallthru
        _
    $region32: #{_lambda_.4} parent=5 // pred_fallthru
      _
    %p443 = scmp.le.s32.totalorder 2, %s9
    // Predicated region
    $region37: #{_lambda_.4} parent=5 // pred_check
      %p444 = pneg %p443
    $region38: #{_lambda_.4} parent=5 // pred_check_branch
      %446 = sbr.rel (%p444) target = $region40
    $region39: #{_lambda_.4} parent=5 // pred_region
      %s447 = ssub.s32 %s9, 2
      // Predicated region
      $region41: #{_lambda_.4} parent=39 // pred_check
        %p448 = pneg %p106
      $region42: #{_lambda_.4} parent=39 // pred_check_branch
        %450 = sbr.rel (%p448) target = $region44
      $region43: #{_lambda_.4} parent=39 // pred_region
        %s451 = smul.u32 8, %s15
        %p452 = scmp.lt.s32.totalorder %s451, 15
        %s453 = scalar_select %p452, %s451, 15
        %s454 = smul.addr %s453, 8
        %s455 = scalar_lea.vmem %s3, %s454
      $region44: #{_lambda_.4} parent=39 // pred_fallthru
        _
    $region40: #{_lambda_.4} parent=5 // pred_fallthru
      _
  $region6: #{_lambda_.4} parent=0 // loop_footer
    %s13 = sadd.s32 1, %s9
  $region7: #{_lambda_.4} parent=0 // loop_footer_branch
    %8 = sbr.rel target = $region3
  $region8: #{_lambda_.4} parent=0 // loop_exit
    _

// kernel: _lambda_.5
$region0: #{_lambda_.5}
  #allocation0 [shape = 'u32[]', space=smem, size = 0x4, offset = 0x4, fixed_abs, tag = 'smem constant byte address 0x4 - core index']
  #allocation1 [shape = 'u32[144,128]{1,0:T(1,128)}', space=vmem, size = 0x12000, scoped, tag = 'internal scratch']
  %s0 = inlined_call_operand.vmem [shape: bf16[16,384], index: 0, kind: input, shape index: {}]
  %s1 = inlined_call_operand.vmem [shape: bf16[384,128], index: 1, kind: input, shape index: {}]
  %s2 = inlined_call_operand.vmem [shape: f32[1,128], index: 2, kind: input, shape index: {}]
  %s3 = inlined_call_operand.vmem [shape: bf16[128,128], index: 3, kind: input, shape index: {}]
  %s4 = inlined_call_operand.vmem [shape: f32[1,128], index: 4, kind: input, shape index: {}]
  %s5 = inlined_call_operand.vmem [shape: f32[16,128], index: 5, kind: input, shape index: {}]
  %s6 = inlined_call_operand.vmem [shape: f32[16,128], index: 6, kind: output, shape index: {0}]
  %s7 = inlined_call_operand.vmem [shape: f32[16,128], index: 7, kind: output, shape index: {1}]
  %s8 = inlined_call_operand.vmem [shape: f32[16,128], index: 8, kind: output, shape index: {2}]
  %9 = xla_tuple %s6, %s7, %s8
  %s10 = sld [smem:[#allocation0]]
  $region50: #{_lambda_.5} parent=0
    _
  %s12 = ssub.s32 1, %s10
  %s13 = scalar_select 0, %s12, %s10
  // Predicated region
  $region2: #{_lambda_.5} parent=0 // pred_check
    _
  $region3: #{_lambda_.5} parent=0 // pred_check_branch
    %15 = sbr.rel (0) target = $region5
  $region4: #{_lambda_.5} parent=0 // pred_region
    _
  $region5: #{_lambda_.5} parent=0 // pred_fallthru
    _
  // Predicated region
  $region6: #{_lambda_.5} parent=0 // pred_check
    _
  $region7: #{_lambda_.5} parent=0 // pred_check_branch
    %17 = sbr.rel (0) target = $region9
  $region8: #{_lambda_.5} parent=0 // pred_region
    _
  $region9: #{_lambda_.5} parent=0 // pred_fallthru
    _
  // Predicated region
  $region10: #{_lambda_.5} parent=0 // pred_check
    _
  $region11: #{_lambda_.5} parent=0 // pred_check_branch
    %19 = sbr.rel (0) target = $region13
  $region12: #{_lambda_.5} parent=0 // pred_region
    _
  $region13: #{_lambda_.5} parent=0 // pred_fallthru
    _
  // Predicated region
  $region14: #{_lambda_.5} parent=0 // pred_check
    _
  $region15: #{_lambda_.5} parent=0 // pred_check_branch
    %21 = sbr.rel (0) target = $region17
  $region16: #{_lambda_.5} parent=0 // pred_region
    _
  $region17: #{_lambda_.5} parent=0 // pred_fallthru
    _
  // Predicated region
  $region18: #{_lambda_.5} parent=0 // pred_check
    _
  $region19: #{_lambda_.5} parent=0 // pred_check_branch
    %23 = sbr.rel (0) target = $region21
  $region20: #{_lambda_.5} parent=0 // pred_region
    _
  $region21: #{_lambda_.5} parent=0 // pred_fallthru
    _
  // Predicated region
  $region22: #{_lambda_.5} parent=0 // pred_check
    _
  $region23: #{_lambda_.5} parent=0 // pred_check_branch
    %25 = sbr.rel (0) target = $region25
  $region24: #{_lambda_.5} parent=0 // pred_region
    _
  $region25: #{_lambda_.5} parent=0 // pred_fallthru
    _
  %v27 = vld [vmem:[%s0] sm:$0xff]
  %v28 = vld [vmem:[%s0 + $0x8] sm:$0xf]
  %v29 = vld [vmem:[%s0 + $0xc] sm:$0xff]
  %v30 = vld [vmem:[%s0 + $0x14] sm:$0xf]
  %v31 = vld [vmem:[%s1] sm:$0xf]
  %v32 = vld [vmem:[%s1 + $0x4] sm:$0xf]
  %v33 = vld [vmem:[%s1 + $0x8] sm:$0xf]
  %v34 = vld [vmem:[%s1 + $0xc] sm:$0xf]
  %v35 = vld [vmem:[%s1 + $0x10] sm:$0xf]
  %v36 = vld [vmem:[%s1 + $0x14] sm:$0xf]
  %v37 = vld [vmem:[%s1 + $0x18] sm:$0xf]
  %v38 = vld [vmem:[%s1 + $0x1c] sm:$0xf]
  %v39 = vld [vmem:[%s1 + $0x20] sm:$0xf]
  %v40 = vld [vmem:[%s1 + $0x24] sm:$0xf]
  %v41 = vld [vmem:[%s1 + $0x28] sm:$0xf]
  %v42 = vld [vmem:[%s1 + $0x2c] sm:$0xf]
  %v43 = vld [vmem:[%s1 + $0x30] sm:$0xf]
  %v44 = vld [vmem:[%s1 + $0x34] sm:$0xf]
  %v45 = vld [vmem:[%s1 + $0x38] sm:$0xf]
  %v46 = vld [vmem:[%s1 + $0x3c] sm:$0xf]
  %v47 = vld [vmem:[%s1 + $0x40] sm:$0xf]
  %v48 = vld [vmem:[%s1 + $0x44] sm:$0xf]
  %v49 = vld [vmem:[%s1 + $0x48] sm:$0xf]
  %v50 = vld [vmem:[%s1 + $0x4c] sm:$0xf]
  %v51 = vld [vmem:[%s1 + $0x50] sm:$0xf]
  %v52 = vld [vmem:[%s1 + $0x54] sm:$0xf]
  %v53 = vld [vmem:[%s1 + $0x58] sm:$0xf]
  %v54 = vld [vmem:[%s1 + $0x5c] sm:$0xf]
  %v55 = vld [vmem:[%s1 + $0x60] sm:$0xf]
  %v56 = vld [vmem:[%s1 + $0x64] sm:$0xf]
  %v57 = vld [vmem:[%s1 + $0x68] sm:$0xf]
  %v58 = vld [vmem:[%s1 + $0x6c] sm:$0xf]
  %v59 = vld [vmem:[%s1 + $0x70] sm:$0xf]
  %v60 = vld [vmem:[%s1 + $0x74] sm:$0xf]
  %v61 = vld [vmem:[%s1 + $0x78] sm:$0xf]
  %v62 = vld [vmem:[%s1 + $0x7c] sm:$0xf]
  %v63 = vld [vmem:[%s1 + $0x80] sm:$0xf]
  %v64 = vld [vmem:[%s1 + $0x84] sm:$0xf]
  %v65 = vld [vmem:[%s1 + $0x88] sm:$0xf]
  %v66 = vld [vmem:[%s1 + $0x8c] sm:$0xf]
  %v67 = vld [vmem:[%s1 + $0x90] sm:$0xf]
  %v68 = vld [vmem:[%s1 + $0x94] sm:$0xf]
  %v69 = vld [vmem:[%s1 + $0x98] sm:$0xf]
  %v70 = vld [vmem:[%s1 + $0x9c] sm:$0xf]
  %v71 = vld [vmem:[%s1 + $0xa0] sm:$0xf]
  %v72 = vld [vmem:[%s1 + $0xa4] sm:$0xf]
  %v73 = vld [vmem:[%s1 + $0xa8] sm:$0xf]
  %v74 = vld [vmem:[%s1 + $0xac] sm:$0xf]
  %v75 = vld [vmem:[%s1 + $0xb0] sm:$0xf]
  %v76 = vld [vmem:[%s1 + $0xb4] sm:$0xf]
  %v77 = vld [vmem:[%s1 + $0xb8] sm:$0xf]
  %v78 = vld [vmem:[%s1 + $0xbc] sm:$0xf]
  %v79 = vld [vmem:[%s2] sm:$0x1]
  %v81 = vlaneseq
  %v82 = vshrl.u32 %v81, 7
  %v83 = vsub.s32 0, %v82
  %v84 = vrot.slane %v79, %v83
  %v90 = vunpack.c.l.b16 %v27
  %v91 = vunpack.c.h.b16 %v27
  %v92 = vunpack.c.l.b16 %v28
  %v93 = vunpack.c.l.b16 %v29
  %v94 = vunpack.c.h.b16 %v29
  %v95 = vunpack.c.l.b16 %v30
  %v96 = vpack.c.b16 %v93, %v90
  %v97 = vpack.c.b16 %v94, %v91
  %v98 = vpack.c.b16 %v95, %v92
  %v150 = vunpack.c.l.b16 %v31
  %v151 = vunpack.c.l.b16 %v32
  %v152 = vunpack.c.l.b16 %v33
  %v153 = vunpack.c.l.b16 %v34
  %v154 = vunpack.c.l.b16 %v35
  %v155 = vunpack.c.l.b16 %v36
  %v156 = vunpack.c.l.b16 %v37
  %v157 = vunpack.c.l.b16 %v38
  %v158 = vunpack.c.l.b16 %v39
  %v159 = vunpack.c.l.b16 %v40
  %v160 = vunpack.c.l.b16 %v41
  %v161 = vunpack.c.l.b16 %v42
  %v162 = vunpack.c.l.b16 %v43
  %v163 = vunpack.c.l.b16 %v44
  %v164 = vunpack.c.l.b16 %v45
  %v165 = vunpack.c.l.b16 %v46
  %v166 = vunpack.c.l.b16 %v47
  %v167 = vunpack.c.l.b16 %v48
  %v168 = vunpack.c.l.b16 %v49
  %v169 = vunpack.c.l.b16 %v50
  %v170 = vunpack.c.l.b16 %v51
  %v171 = vunpack.c.l.b16 %v52
  %v172 = vunpack.c.l.b16 %v53
  %v173 = vunpack.c.l.b16 %v54
  %v174 = vunpack.c.l.b16 %v55
  %v175 = vunpack.c.l.b16 %v56
  %v176 = vunpack.c.l.b16 %v57
  %v177 = vunpack.c.l.b16 %v58
  %v178 = vunpack.c.l.b16 %v59
  %v179 = vunpack.c.l.b16 %v60
  %v180 = vunpack.c.l.b16 %v61
  %v181 = vunpack.c.l.b16 %v62
  %v182 = vunpack.c.l.b16 %v63
  %v183 = vunpack.c.l.b16 %v64
  %v184 = vunpack.c.l.b16 %v65
  %v185 = vunpack.c.l.b16 %v66
  %v186 = vunpack.c.l.b16 %v67
  %v187 = vunpack.c.l.b16 %v68
  %v188 = vunpack.c.l.b16 %v69
  %v189 = vunpack.c.l.b16 %v70
  %v190 = vunpack.c.l.b16 %v71
  %v191 = vunpack.c.l.b16 %v72
  %v192 = vunpack.c.l.b16 %v73
  %v193 = vunpack.c.l.b16 %v74
  %v194 = vunpack.c.l.b16 %v75
  %v195 = vunpack.c.l.b16 %v76
  %v196 = vunpack.c.l.b16 %v77
  %v197 = vunpack.c.l.b16 %v78
  %v198 = vpack.c.b16 %v151, %v150
  %v199 = vpack.c.b16 %v153, %v152
  %v200 = vpack.c.b16 %v155, %v154
  %v201 = vpack.c.b16 %v157, %v156
  %v202 = vpack.c.b16 %v159, %v158
  %v203 = vpack.c.b16 %v161, %v160
  %v204 = vpack.c.b16 %v163, %v162
  %v205 = vpack.c.b16 %v165, %v164
  %v206 = vpack.c.b16 %v167, %v166
  %v207 = vpack.c.b16 %v169, %v168
  %v208 = vpack.c.b16 %v171, %v170
  %v209 = vpack.c.b16 %v173, %v172
  %v210 = vpack.c.b16 %v175, %v174
  %v211 = vpack.c.b16 %v177, %v176
  %v212 = vpack.c.b16 %v179, %v178
  %v213 = vpack.c.b16 %v181, %v180
  %v214 = vpack.c.b16 %v183, %v182
  %v215 = vpack.c.b16 %v185, %v184
  %v216 = vpack.c.b16 %v187, %v186
  %v217 = vpack.c.b16 %v189, %v188
  %v218 = vpack.c.b16 %v191, %v190
  %v219 = vpack.c.b16 %v193, %v192
  %v220 = vpack.c.b16 %v195, %v194
  %v221 = vpack.c.b16 %v197, %v196
  %246 = vmatprep.subr.bf16.mxu0 0
  %247 = vmatpush1.bf16.msra.mxu0 %v198
  %248 = vmatprep.subr.bf16.mxu0 0
  %249 = vmatpush1.bf16.msra.mxu0 %v199
  %250 = vmatprep.subr.bf16.mxu0 0
  %251 = vmatpush1.bf16.msra.mxu0 %v200
  %252 = vmatprep.subr.bf16.mxu0 0
  %253 = vmatpush1.bf16.msra.mxu0 %v201
  %254 = vmatprep.subr.bf16.mxu0 0
  %255 = vmatpush1.bf16.msra.mxu0 %v202
  %256 = vmatprep.subr.bf16.mxu0 0
  %257 = vmatpush1.bf16.msra.mxu0 %v203
  %258 = vmatprep.subr.bf16.mxu0 0
  %259 = vmatpush1.bf16.msra.mxu0 %v204
  %260 = vmatprep.subr.bf16.mxu0 0
  %261 = vmatpush1.bf16.msra.mxu0 %v205
  %262 = vmatprep.subr.bf16.mxu0 0
  %263 = vmatpush1.bf16.msra.mxu0 %v206
  %264 = vmatprep.subr.bf16.mxu0 0
  %265 = vmatpush1.bf16.msra.mxu0 %v207
  %266 = vmatprep.subr.bf16.mxu0 0
  %267 = vmatpush1.bf16.msra.mxu0 %v208
  %268 = vmatprep.subr.bf16.mxu0 0
  %269 = vmatpush1.bf16.msra.mxu0 %v209
  %270 = vmatprep.subr.bf16.mxu0 0
  %271 = vmatpush1.bf16.msra.mxu0 %v210
  %272 = vmatprep.subr.bf16.mxu0 0
  %273 = vmatpush1.bf16.msra.mxu0 %v211
  %274 = vmatprep.subr.bf16.mxu0 0
  %275 = vmatpush1.bf16.msra.mxu0 %v212
  %276 = vmatprep.subr.bf16.mxu0 0
  %277 = vmatpush1.bf16.msra.mxu0 %v213
  %278 = vmatprep.mubr.bf16.mxu0 %v97
  %279 = vmatmul.mubr.bf16.gmra.mrb[0].mxu0 %v96
  %v280 = vpop.f32.mrb[0].mxu0
  %v281 = vadd.f32 %v84, %v280
  %v282 = vpop.f32.mrb[0].mxu0
  %v283 = vpop.f32.mrb[0].mxu0
  %v284 = vadd.f32 %v84, %v283
  %v285 = vpop.f32.mrb[0].mxu0
  %286 = vdwg.mxu0
  %287 = vmatprep.subr.bf16.mxu0 0
  %288 = vmatpush1.bf16.msra.mxu0 %v214
  %289 = vmatprep.subr.bf16.mxu0 0
  %290 = vmatpush1.bf16.msra.mxu0 %v215
  %291 = vmatprep.subr.bf16.mxu0 0
  %292 = vmatpush1.bf16.msra.mxu0 %v216
  %293 = vmatprep.subr.bf16.mxu0 0
  %294 = vmatpush1.bf16.msra.mxu0 %v217
  %295 = vmatprep.subr.bf16.mxu0 0
  %296 = vmatpush1.bf16.msra.mxu0 %v218
  %297 = vmatprep.subr.bf16.mxu0 0
  %298 = vmatpush1.bf16.msra.mxu0 %v219
  %299 = vmatprep.subr.bf16.mxu0 0
  %300 = vmatpush1.bf16.msra.mxu0 %v220
  %301 = vmatprep.subr.bf16.mxu0 0
  %302 = vmatpush1.bf16.msra.mxu0 %v221
  %303 = vmatprep.subr.bf16.mxu0 0
  %304 = vmatpush1.bf16.msra.mxu0 0
  %305 = vmatprep.subr.bf16.mxu0 0
  %306 = vmatpush1.bf16.msra.mxu0 0
  %307 = vmatprep.subr.bf16.mxu0 0
  %308 = vmatpush1.bf16.msra.mxu0 0
  %309 = vmatprep.subr.bf16.mxu0 0
  %310 = vmatpush1.bf16.msra.mxu0 0
  %311 = vmatprep.subr.bf16.mxu0 0
  %312 = vmatpush1.bf16.msra.mxu0 0
  %313 = vmatprep.subr.bf16.mxu0 0
  %314 = vmatpush1.bf16.msra.mxu0 0
  %315 = vmatprep.subr.bf16.mxu0 0
  %316 = vmatpush1.bf16.msra.mxu0 0
  %317 = vmatprep.subr.bf16.mxu0 0
  %318 = vmatpush1.bf16.msra.mxu0 0
  %319 = vmatprep.mubr.bf16.mxu0 0
  %320 = vmatmul.mubr.bf16.gmra.mrb[0].mxu0 %v98
  %v321 = vpop.f32.mrb[0].mxu0
  %v322 = vadd.f32 %v281, %v321
  %v323 = vpop.f32.mrb[0].mxu0
  %v324 = vpop.f32.mrb[0].mxu0
  %v325 = vadd.f32 %v284, %v324
  %v326 = vpop.f32.mrb[0].mxu0
  %327 = vdwg.mxu0
  %328 = vst [vmem:[%s6] sm:$0xff] %v322
  %329 = vst [vmem:[%s6 + $0x8] sm:$0xff] %v325
  %v330 = vmax.f32 %v322, 0.0
  %v331 = vmax.f32 %v325, 0.0
  %v332 = vld [vmem:[%s5] sm:$0xff]
  %v333 = vld [vmem:[%s5 + $0x8] sm:$0xff]
  %v334 = vmul.f32 %v330, %v332
  %v335 = vmul.f32 %v331, %v333
  %v336 = vpack.c.bf16 %v335, %v334
  %v337 = vld [vmem:[%s3] sm:$0xf]
  %v338 = vld [vmem:[%s3 + $0x4] sm:$0xf]
  %v339 = vld [vmem:[%s3 + $0x8] sm:$0xf]
  %v340 = vld [vmem:[%s3 + $0xc] sm:$0xf]
  %v341 = vld [vmem:[%s3 + $0x10] sm:$0xf]
  %v342 = vld [vmem:[%s3 + $0x14] sm:$0xf]
  %v343 = vld [vmem:[%s3 + $0x18] sm:$0xf]
  %v344 = vld [vmem:[%s3 + $0x1c] sm:$0xf]
  %v345 = vld [vmem:[%s3 + $0x20] sm:$0xf]
  %v346 = vld [vmem:[%s3 + $0x24] sm:$0xf]
  %v347 = vld [vmem:[%s3 + $0x28] sm:$0xf]
  %v348 = vld [vmem:[%s3 + $0x2c] sm:$0xf]
  %v349 = vld [vmem:[%s3 + $0x30] sm:$0xf]
  %v350 = vld [vmem:[%s3 + $0x34] sm:$0xf]
  %v351 = vld [vmem:[%s3 + $0x38] sm:$0xf]
  %v352 = vld [vmem:[%s3 + $0x3c] sm:$0xf]
  %v353 = vld [vmem:[%s4] sm:$0x1]
  %v355 = vlaneseq
  %v356 = vshrl.u32 %v355, 7
  %v357 = vsub.s32 0, %v356
  %v358 = vrot.slane %v353, %v357
  %v376 = vunpack.c.l.b16 %v337
  %v377 = vunpack.c.l.b16 %v338
  %v378 = vunpack.c.l.b16 %v339
  %v379 = vunpack.c.l.b16 %v340
  %v380 = vunpack.c.l.b16 %v341
  %v381 = vunpack.c.l.b16 %v342
  %v382 = vunpack.c.l.b16 %v343
  %v383 = vunpack.c.l.b16 %v344
  %v384 = vunpack.c.l.b16 %v345
  %v385 = vunpack.c.l.b16 %v346
  %v386 = vunpack.c.l.b16 %v347
  %v387 = vunpack.c.l.b16 %v348
  %v388 = vunpack.c.l.b16 %v349
  %v389 = vunpack.c.l.b16 %v350
  %v390 = vunpack.c.l.b16 %v351
  %v391 = vunpack.c.l.b16 %v352
  %v392 = vpack.c.b16 %v377, %v376
  %v393 = vpack.c.b16 %v379, %v378
  %v394 = vpack.c.b16 %v381, %v380
  %v395 = vpack.c.b16 %v383, %v382
  %v396 = vpack.c.b16 %v385, %v384
  %v397 = vpack.c.b16 %v387, %v386
  %v398 = vpack.c.b16 %v389, %v388
  %v399 = vpack.c.b16 %v391, %v390
  %408 = vmatprep.subr.bf16.mxu0 0
  %409 = vmatpush1.bf16.msra.mxu0 %v392
  %410 = vmatprep.subr.bf16.mxu0 0
  %411 = vmatpush1.bf16.msra.mxu0 %v393
  %412 = vmatprep.subr.bf16.mxu0 0
  %413 = vmatpush1.bf16.msra.mxu0 %v394
  %414 = vmatprep.subr.bf16.mxu0 0
  %415 = vmatpush1.bf16.msra.mxu0 %v395
  %416 = vmatprep.subr.bf16.mxu0 0
  %417 = vmatpush1.bf16.msra.mxu0 %v396
  %418 = vmatprep.subr.bf16.mxu0 0
  %419 = vmatpush1.bf16.msra.mxu0 %v397
  %420 = vmatprep.subr.bf16.mxu0 0
  %421 = vmatpush1.bf16.msra.mxu0 %v398
  %422 = vmatprep.subr.bf16.mxu0 0
  %423 = vmatpush1.bf16.msra.mxu0 %v399
  %424 = vmatprep.subr.bf16.mxu0 0
  %425 = vmatpush1.bf16.msra.mxu0 0
  %426 = vmatprep.subr.bf16.mxu0 0
  %427 = vmatpush1.bf16.msra.mxu0 0
  %428 = vmatprep.subr.bf16.mxu0 0
  %429 = vmatpush1.bf16.msra.mxu0 0
  %430 = vmatprep.subr.bf16.mxu0 0
  %431 = vmatpush1.bf16.msra.mxu0 0
  %432 = vmatprep.subr.bf16.mxu0 0
  %433 = vmatpush1.bf16.msra.mxu0 0
  %434 = vmatprep.subr.bf16.mxu0 0
  %435 = vmatpush1.bf16.msra.mxu0 0
  %436 = vmatprep.subr.bf16.mxu0 0
  %437 = vmatpush1.bf16.msra.mxu0 0
  %438 = vmatprep.subr.bf16.mxu0 0
  %439 = vmatpush1.bf16.msra.mxu0 0
  %440 = vmatprep.mubr.bf16.mxu0 0
  %441 = vmatmul.mubr.bf16.gmra.mrb[0].mxu0 %v336
  %v442 = vpop.f32.mrb[0].mxu0
  %v443 = vadd.f32 %v358, %v442
  %v444 = vpop.f32.mrb[0].mxu0
  %v445 = vpop.f32.mrb[0].mxu0
  %v446 = vadd.f32 %v358, %v445
  %v447 = vpop.f32.mrb[0].mxu0
  %448 = vdwg.mxu0
  %449 = vst [vmem:[%s7] sm:$0xff] %v443
  %450 = vst [vmem:[%s7 + $0x8] sm:$0xff] %v446
  %v451 = vlaneseq
  %v452 = vand.u32 %v451, 127
  %vm453 = vcmp.lt.s32.totalorder %v452, 10
  %v454 = vsel %vm453, %v443, -1e+30
  %v455 = vsel %vm453, %v446, -1e+30
  %456 = vmax.xlane.f32.xlu0 %v454
  %v457 = vpop.xlane.xlu0 %456
  %458 = vmax.xlane.f32.xlu0 %v455
  %v459 = vpop.xlane.xlu0 %458
  %v460 = vsub.f32 %v443, %v457
  %v461 = vsub.f32 %v446, %v459
  %v462 = vmul.f32 %v460, 1.442695
  %v463 = vpow.pop %v462
  %v464 = vmul.f32 %v461, 1.442695
  %v465 = vpow.pop %v464
  %v466 = vsel %vm453, %v463, 0.0
  %v467 = vsel %vm453, %v465, 0.0
  %468 = vadd.xlane.f32.xlu0 %v466
  %v469 = vpop.xlane.xlu0 %468
  %470 = vadd.xlane.f32.xlu0 %v467
  %v471 = vpop.xlane.xlu0 %470
  %v472 = vlog2.pop %v469
  %v473 = vmul.f32 %v472, 0.6931472
  %v474 = vlog2.pop %v471
  %v475 = vmul.f32 %v474, 0.6931472
  %v476 = vadd.f32 %v473, %v457
  %v477 = vadd.f32 %v475, %v459
  %v478 = vsub.f32 %v443, %v476
  %v479 = vsub.f32 %v446, %v477
  %480 = vst [vmem:[%s8] sm:$0xff] %v478
  %481 = vst [vmem:[%s8 + $0x8] sm:$0xff] %v479
  // Predicated region
  $region26: #{_lambda_.5} parent=0 // pred_check
    _
  $region27: #{_lambda_.5} parent=0 // pred_check_branch
    %483 = sbr.rel (0) target = $region29
  $region28: #{_lambda_.5} parent=0 // pred_region
    _
  $region29: #{_lambda_.5} parent=0 // pred_fallthru
    _
  // Predicated region
  $region30: #{_lambda_.5} parent=0 // pred_check
    _
  $region31: #{_lambda_.5} parent=0 // pred_check_branch
    %485 = sbr.rel (0) target = $region33
  $region32: #{_lambda_.5} parent=0 // pred_region
    _
  $region33: #{_lambda_.5} parent=0 // pred_fallthru
    _
  // Predicated region
  $region34: #{_lambda_.5} parent=0 // pred_check
    _
  $region35: #{_lambda_.5} parent=0 // pred_check_branch
    %487 = sbr.rel (0) target = $region37
  $region36: #{_lambda_.5} parent=0 // pred_region
    _
  $region37: #{_lambda_.5} parent=0 // pred_fallthru
    _
  // Predicated region
  $region38: #{_lambda_.5} parent=0 // pred_check
    _
  $region39: #{_lambda_.5} parent=0 // pred_check_branch
    %489 = sbr.rel (0) target = $region41
  $region40: #{_lambda_.5} parent=0 // pred_region
    _
  $region41: #{_lambda_.5} parent=0 // pred_fallthru
    _
  // Predicated region
  $region42: #{_lambda_.5} parent=0 // pred_check
    _
  $region43: #{_lambda_.5} parent=0 // pred_check_branch
    %491 = sbr.rel (0) target = $region45
  $region44: #{_lambda_.5} parent=0 // pred_region
    _
  $region45: #{_lambda_.5} parent=0 // pred_fallthru
    _
  // Predicated region
  $region46: #{_lambda_.5} parent=0 // pred_check
    _
  $region47: #{_lambda_.5} parent=0 // pred_check_branch
    %493 = sbr.rel (0) target = $region49
  $region48: #{_lambda_.5} parent=0 // pred_region
    _
  $region49: #{_lambda_.5} parent=0 // pred_fallthru
    _

</llo_original>
